<compile_context>
chip_gen: v7x
topology: tpu7x:2x2x1
jax: 0.10.0
libtpu: 0.0.40
codegen_flags: <defaults>
</compile_context>

<pallas_src>
import functools

import jax
import jax.numpy as jnp
import numpy as np
from jax import lax
from jax.experimental import pallas as pl
from jax.experimental.pallas import tpu as pltpu


# --------------------------------------------------------------------------
# Shared input prep: fold mask into hidden, pad L to a multiple of 8,
# cast to bf16, zero-pad vocab to a multiple of the tile width.
# --------------------------------------------------------------------------
def _prep_splade_inputs(hidden, w_lm, attention_mask, tv):
    B, L, H = hidden.shape
    V = w_lm.shape[1]
    v_pad = int(pl.cdiv(V, tv)) * tv
    l_pad = int(pl.cdiv(L, 8)) * 8

    # Pre-mask: log(1 + relu(0)) = 0, identical to masking the activations.
    hid = hidden * attention_mask[..., None].astype(hidden.dtype)
    if l_pad != L:
        hid = jnp.pad(hid, ((0, 0), (0, l_pad - L), (0, 0)))
    hid2 = hid.astype(jnp.bfloat16).reshape(B * l_pad, H)

    w = w_lm.astype(jnp.bfloat16)
    if v_pad != V:
        w = jnp.pad(w, ((0, 0), (0, v_pad - V)))   # zero cols -> act = 0, safe
    return hid2, w, l_pad, v_pad


# --------------------------------------------------------------------------
# Kernel 1 (T5Splade.encode): LM-head projection + SPLADE max-pooling
# --------------------------------------------------------------------------
def splade_lmhead_kernel(hid_ref, w_ref, out_ref, *, B, L):
    # hid_ref: (B*L, H) bf16 resident (mask pre-applied, L padded to 8)
    # w_ref  : (H, TV)  bf16 streamed LM-head tile
    # out_ref: (B, TV)  f32
    logits = jnp.dot(hid_ref[...], w_ref[...],
                     preferred_element_type=jnp.float32)        # (B*L, TV)
    act = jnp.log(1.0 + jnp.maximum(logits, 0.0))
    out_ref[...] = jnp.max(act.reshape(B, L, act.shape[-1]), axis=1)


def splade_encode(hidden, w_lm, attention_mask, *, tv=1024):
    """query_rep = max_L( log(1 + relu(hidden @ W_lm)) * mask ) -> (B, V) f32."""
    B, L, H = hidden.shape
    V = w_lm.shape[1]
    hid2, w, l_pad, v_pad = _prep_splade_inputs(hidden, w_lm, attention_mask, tv)

    kernel = functools.partial(splade_lmhead_kernel, B=B, L=l_pad)
    out = pl.pallas_call(
        kernel,
        out_shape=jax.ShapeDtypeStruct((B, v_pad), jnp.float32),
        grid_spec=pltpu.PrefetchScalarGridSpec(
            num_scalar_prefetch=0,
            grid=(v_pad // tv,),
            in_specs=[
                pl.BlockSpec(memory_space=pltpu.MemorySpace.VMEM),  # resident
                pl.BlockSpec((H, tv), lambda v: (0, v)),            # streamed
            ],
            out_specs=pl.BlockSpec((B, tv), lambda v: (0, v)),
        ),
        compiler_params=pltpu.CompilerParams(
            dimension_semantics=("parallel",),
            vmem_limit_bytes=64 * 1024 * 1024),
    )(hid2, w)
    return out[:, :V]


# --------------------------------------------------------------------------
# Kernel 2 (forward): fused SPLADE + MarginMSE gather/loss
# --------------------------------------------------------------------------
def fused_splade_margin_mse_kernel(hid_ref, w_ref, pos_ref, neg_ref, tdiff_ref,
                                   loss_ref, acc_pos_ref, acc_neg_ref,
                                   *, B, L, bc):
    # hid_ref : (B*L, H) bf16 resident (mask pre-applied, L padded to 8)
    # w_ref   : (H, TV)  bf16 streamed LM-head tile (DMA'd from HBM once)
    # pos_ref / neg_ref: (B, K) int32 resident; tdiff_ref: (B, 1) f32 resident
    # loss_ref: (1, 1) f32; acc_*_ref: (n_chunks, bc, 1) f32 scratch accumulators
    v = pl.program_id(0)
    tv = w_ref.shape[1]
    K = pos_ref.shape[1]
    n_chunks = B // bc
    rows = bc * L

    @pl.when(v == 0)
    def _init():
        acc_pos_ref[...] = jnp.zeros_like(acc_pos_ref)
        acc_neg_ref[...] = jnp.zeros_like(acc_neg_ref)

    w_tile = w_ref[...]                                       # (H, TV) bf16
    base = v * tv                                             # first vocab id of tile
    lane = lax.broadcasted_iota(jnp.int32, (bc, tv), 1)       # built once, hoisted

    def chunk_body(c, carry):
        r0 = pl.multiple_of(c * rows, 8)
        b0 = c * bc
        # Bounded f32 intermediate: only this chunk's rows.
        logits = jnp.dot(hid_ref[pl.ds(r0, rows), :], w_tile,
                         preferred_element_type=jnp.float32)  # (rows, TV)
        act = jnp.log(1.0 + jnp.maximum(logits, 0.0))         # mask pre-applied
        rep = jnp.max(act.reshape(bc, L, tv), axis=1)          # (bc, TV) SPLADE rep

        def gathered(idx_ref):
            # Per-row count vector; duplicates double-count (torch.gather+sum).
            idx = idx_ref[pl.ds(b0, bc), :] - base              # (bc, K) local ids
            cnt = jnp.zeros((bc, tv), jnp.float32)
            for k in range(K):                                  # K small & static
                cnt = cnt + (lane == idx[:, k:k + 1]).astype(jnp.float32)
            return jnp.sum(rep * cnt, axis=1, keepdims=True)    # (bc, 1)

        acc_pos_ref[c] = acc_pos_ref[c] + gathered(pos_ref)
        acc_neg_ref[c] = acc_neg_ref[c] + gathered(neg_ref)
        return carry

    lax.fori_loop(0, n_chunks, chunk_body, 0, unroll=True)

    @pl.when(v == pl.num_programs(0) - 1)
    def _finalize():
        pos_s = acc_pos_ref[...].reshape(B, 1)
        neg_s = acc_neg_ref[...].reshape(B, 1)
        err = (pos_s - neg_s) - tdiff_ref[...]
        loss_ref[...] = jnp.sum(err * err, keepdims=True) * (1.0 / B)


def t5_term_encoder_margin_mse_forward(hidden, w_lm, attention_mask,
                                       pos_doc_encoding, neg_doc_encoding,
                                       teacher_pos_scores, teacher_neg_scores,
                                       *, tv=1024, batch_chunk=8):
    """Matches T5TermEncoderForMarginMSE.forward -> {'rank': MSE loss}."""
    B, L, H = hidden.shape
    hid2, w, l_pad, v_pad = _prep_splade_inputs(hidden, w_lm, attention_mask, tv)

    bc = max(1, min(batch_chunk, B))
    while B % bc:           # chunks must hold whole queries and tile the batch
        bc -= 1
    n_chunks = B // bc

    pos = pos_doc_encoding.astype(jnp.int32)
    neg = neg_doc_encoding.astype(jnp.int32)
    tdiff = (teacher_pos_scores.astype(jnp.float32)
             - teacher_neg_scores.astype(jnp.float32)).reshape(B, 1)

    kernel = functools.partial(fused_splade_margin_mse_kernel,
                               B=B, L=l_pad, bc=bc)
    loss = pl.pallas_call(
        kernel,
        out_shape=jax.ShapeDtypeStruct((1, 1), jnp.float32),
        grid_spec=pltpu.PrefetchScalarGridSpec(
            num_scalar_prefetch=0,
            grid=(v_pad // tv,),
            in_specs=[
                # Resident single-copy VMEM operands (not double-buffered).
                pl.BlockSpec(memory_space=pltpu.MemorySpace.VMEM),  # hid2
                # Streamed LM-head tile: DMA'd from HBM exactly once per tile.
                pl.BlockSpec((H, tv), lambda vb: (0, vb)),
                pl.BlockSpec(memory_space=pltpu.MemorySpace.VMEM),  # pos ids
                pl.BlockSpec(memory_space=pltpu.MemorySpace.VMEM),  # neg ids
                pl.BlockSpec(memory_space=pltpu.MemorySpace.VMEM),  # teacher diff
            ],
            out_specs=pl.BlockSpec((1, 1), lambda vb: (0, 0)),
            scratch_shapes=[pltpu.VMEM((n_chunks, bc, 1), jnp.float32),
                            pltpu.VMEM((n_chunks, bc, 1), jnp.float32)]),
        compiler_params=pltpu.CompilerParams(
            # Vocab axis carries the pos/neg accumulators -> reduction.
            dimension_semantics=("arbitrary",),
            # 2x the 32 MiB scoped default; sweep toward ~100 MiB on v5e/v6e
            # (128 MiB physical); keep <= 64 MiB on v7x.
            vmem_limit_bytes=64 * 1024 * 1024),
    )(hid2, w, pos, neg, tdiff)
    return {"rank": loss[0, 0]}


if __name__ == "__main__":
    key = jax.random.PRNGKey(0)
    # Small shapes: L=6 exercises the L->8 padding, TV=512 with V=1000 gives
    # two vocab tiles (cross-tile accumulation), batch_chunk=1 gives two
    # batch chunks (exercises the in-kernel chunk loop).
    B, L, H, V, K, TV = 2, 6, 64, 1000, 4, 512
    keys = jax.random.split(key, 8)

    emb_table = jax.random.normal(keys[0], (V, H), jnp.float32) * 0.02
    w_lm = jax.random.normal(keys[1], (H, V), jnp.float32) * 0.05

    decoder_input_ids = jax.random.randint(keys[2], (B, L), 0, V)
    attention_mask = (jax.random.uniform(keys[3], (B, L)) > 0.2).astype(jnp.float32)
    pos_doc_encoding = jax.random.randint(keys[4], (B, K), 0, V)
    neg_doc_encoding = jax.random.randint(keys[5], (B, K), 0, V)
    teacher_pos_scores = jax.random.normal(keys[6], (B,), jnp.float32)
    teacher_neg_scores = jax.random.normal(keys[7], (B,), jnp.float32)

    # TODO(synk): the full T5ForConditionalGeneration encoder-decoder backbone
    # is not reimplemented; decoder final hidden states are synthesized via a
    # deterministic embedding lookup (plain-JAX glue before the kernels).
    hidden = emb_table[decoder_input_ids]   # (B, L, H)

    out = t5_term_encoder_margin_mse_forward(
        hidden, w_lm, attention_mask, pos_doc_encoding, neg_doc_encoding,
        teacher_pos_scores, teacher_neg_scores, tv=TV, batch_chunk=1)
    loss = jax.block_until_ready(out["rank"])

    # ---------------- pure-JAX reference (same bf16 casting as the kernels) --
    hid_bf = hidden.astype(jnp.bfloat16).astype(jnp.float32)
    w_bf = w_lm.astype(jnp.bfloat16).astype(jnp.float32)
    logits = jnp.einsum("blh,hv->blv", hid_bf, w_bf)
    reps_ref = jnp.max(jnp.log(1.0 + jax.nn.relu(logits))
                       * attention_mask[..., None], axis=1)            # (B, V)
    pos_s = jnp.sum(jnp.take_along_axis(reps_ref, pos_doc_encoding, axis=-1), axis=-1)
    neg_s = jnp.sum(jnp.take_along_axis(reps_ref, neg_doc_encoding, axis=-1), axis=-1)
    ref_loss = jnp.mean(((pos_s - neg_s)
                         - (teacher_pos_scores - teacher_neg_scores)) ** 2)

    rep_kernel = jax.block_until_ready(
        splade_encode(hidden, w_lm, attention_mask, tv=TV))            # (B, V)
    assert np.allclose(np.asarray(rep_kernel), np.asarray(reps_ref),
                       rtol=1e-3, atol=1e-3), "SPLADE rep mismatch"
    assert np.allclose(np.asarray(loss), np.asarray(ref_loss),
                       rtol=1e-3, atol=1e-3), "MarginMSE loss mismatch"

    print("KERNEL_OK")
</pallas_src>

<mosaic_0001>
module attributes {stable_mosaic.version = 11 : i64} {
  func.func @fused_splade_margin_mse_kernel(%arg0: i32, %arg1: memref<16x64xbf16, #tpu.memory_space<vmem>>, %arg2: memref<64x512xbf16, #tpu.memory_space<vmem>>, %arg3: memref<2x4xi32, #tpu.memory_space<vmem>>, %arg4: memref<2x4xi32, #tpu.memory_space<vmem>>, %arg5: memref<2x1xf32, #tpu.memory_space<vmem>>, %arg6: memref<1x1xf32, #tpu.memory_space<vmem>>, %arg7: memref<2x1x1xf32, #tpu.memory_space<vmem>>, %arg8: memref<2x1x1xf32, #tpu.memory_space<vmem>>) attributes {dimension_semantics = [#tpu.dimension_semantics<arbitrary>], iteration_bounds = array<i64: 2>, scalar_prefetch = 0 : i64, scratch_operands = 2 : i64, tpu.core_type = #tpu.core_type<tc>, window_params = [{pipeline_mode = #tpu.pipeline_mode<synchronous>, transform_indices = @transform_0, window_bounds = array<i64: 16, 64>}, {transform_indices = @transform_1, window_bounds = array<i64: 64, 512>}, {pipeline_mode = #tpu.pipeline_mode<synchronous>, transform_indices = @transform_2, window_bounds = array<i64: 2, 4>}, {pipeline_mode = #tpu.pipeline_mode<synchronous>, transform_indices = @transform_3, window_bounds = array<i64: 2, 4>}, {pipeline_mode = #tpu.pipeline_mode<synchronous>, transform_indices = @transform_4, window_bounds = array<i64: 2, 1>}, {pipeline_mode = #tpu.pipeline_mode<synchronous>, transform_indices = @transform_5, window_bounds = array<i64: 1, 1>}]} {
    %c0_i32 = arith.constant 0 : i32
    %0 = arith.cmpi eq, %arg0, %c0_i32 : i32
    %1 = arith.extui %0 : i1 to i32
    %c0_i32_0 = arith.constant 0 : i32
    %2 = arith.cmpi ne, %1, %c0_i32_0 : i32
    scf.if %2 {
      %cst_45 = arith.constant 0.000000e+00 : f32
      %195 = vector.broadcast %cst_45 : f32 to vector<2x1x1xf32>
      %c0_46 = arith.constant 0 : index
      %c0_47 = arith.constant 0 : index
      %c0_48 = arith.constant 0 : index
      %196 = vector.load %arg7[%c0_46, %c0_47, %c0_48] : memref<2x1x1xf32, #tpu.memory_space<vmem>>, vector<2x1x1xf32>
      tpu.vector_store %arg7[%c0_46, %c0_47, %c0_48], %195 {strides = array<i32>} : memref<2x1x1xf32, #tpu.memory_space<vmem>>, vector<2x1x1xf32>,
      %cst_49 = arith.constant 0.000000e+00 : f32
      %197 = vector.broadcast %cst_49 : f32 to vector<2x1x1xf32>
      %c0_50 = arith.constant 0 : index
      %c0_51 = arith.constant 0 : index
      %c0_52 = arith.constant 0 : index
      %198 = vector.load %arg8[%c0_50, %c0_51, %c0_52] : memref<2x1x1xf32, #tpu.memory_space<vmem>>, vector<2x1x1xf32>
      tpu.vector_store %arg8[%c0_50, %c0_51, %c0_52], %197 {strides = array<i32>} : memref<2x1x1xf32, #tpu.memory_space<vmem>>, vector<2x1x1xf32>,
    } else {
    }
    %c0 = arith.constant 0 : index
    %c0_1 = arith.constant 0 : index
    %3 = vector.load %arg2[%c0, %c0_1] : memref<64x512xbf16, #tpu.memory_space<vmem>>, vector<64x512xbf16>
    %c512_i32 = arith.constant 512 : i32
    %4 = arith.muli %arg0, %c512_i32 : i32
    %5 = tpu.iota {dimensions = array<i32: 1>} : vector<1x512xi32>
    %c0_i32_2 = arith.constant 0 : i32
    %c8_i32 = arith.constant 8 : i32
    %6 = arith.muli %c0_i32_2, %c8_i32 : i32
    %7 = tpu.assume_multiple %6, 8 : i32
    %c1_i32 = arith.constant 1 : i32
    %8 = arith.muli %c0_i32_2, %c1_i32 : i32
    %9 = arith.index_cast %7 : i32 to index
    %c0_3 = arith.constant 0 : index
    %10 = vector.load %arg1[%9, %c0_3] : memref<16x64xbf16, #tpu.memory_space<vmem>>, vector<8x64xbf16>
    %cst = arith.constant dense<0.000000e+00> : vector<8x512xf32>
    %11 = tpu.matmul %10, %3, %cst {dimension_numbers = #tpu.dot_dimension_numbers<[1], [0], [0], [1], [0, 0, 1, 1], [], []>} : vector<8x64xbf16>, vector<64x512xbf16>, vector<8x512xf32> -> vector<8x512xf32>
    %cst_4 = arith.constant 0.000000e+00 : f32
    %12 = vector.broadcast %cst_4 : f32 to vector<8x512xf32>
    %13 = arith.maximumf %11, %12 : vector<8x512xf32>
    %cst_5 = arith.constant 1.000000e+00 : f32
    %14 = vector.broadcast %cst_5 : f32 to vector<8x512xf32>
    %15 = arith.addf %14, %13 : vector<8x512xf32>
    %16 = math.log %15 : vector<8x512xf32>
    %17 = vector.shape_cast %16 : vector<8x512xf32> to vector<1x8x512xf32>
    %cst_6 = arith.constant dense<0xFF800000> : vector<1x512xf32>
    %18 = vector.multi_reduction <maximumf>, %17, %cst_6 [1] : vector<1x8x512xf32> to vector<1x512xf32>
    %19 = arith.index_cast %c0_i32_2 : i32 to index
    %c0_7 = arith.constant 0 : index
    %c0_8 = arith.constant 0 : index
    %20 = vector.load %arg7[%19, %c0_7, %c0_8] : memref<2x1x1xf32, #tpu.memory_space<vmem>>, vector<1x1x1xf32>
    %21 = vector.shape_cast %20 : vector<1x1x1xf32> to vector<1x1xf32>
    %22 = arith.index_cast %8 : i32 to index
    %c0_9 = arith.constant 0 : index
    %23 = vector.load %arg3[%22, %c0_9] : memref<2x4xi32, #tpu.memory_space<vmem>>, vector<1x4xi32>
    %24 = vector.broadcast %4 : i32 to vector<1x4xi32>
    %25 = arith.subi %23, %24 : vector<1x4xi32>
    %cst_10 = arith.constant 0.000000e+00 : f32
    %26 = vector.broadcast %cst_10 : f32 to vector<1x512xf32>
    %27 = vector.extract_strided_slice %25 {offsets = [0, 0], sizes = [1, 1], strides = [1, 1]} : vector<1x4xi32> to vector<1x1xi32>
    %28 = vector.broadcast %27 : vector<1x1xi32> to vector<1x512xi32>
    %29 = arith.cmpi eq, %5, %28 : vector<1x512xi32>
    %30 = arith.extui %29 : vector<1x512xi1> to vector<1x512xi32>
    %31 = arith.sitofp %30 : vector<1x512xi32> to vector<1x512xf32>
    %32 = arith.addf %26, %31 : vector<1x512xf32>
    %33 = vector.extract_strided_slice %25 {offsets = [0, 1], sizes = [1, 1], strides = [1, 1]} : vector<1x4xi32> to vector<1x1xi32>
    %34 = vector.broadcast %33 : vector<1x1xi32> to vector<1x512xi32>
    %35 = arith.cmpi eq, %5, %34 : vector<1x512xi32>
    %36 = arith.extui %35 : vector<1x512xi1> to vector<1x512xi32>
    %37 = arith.sitofp %36 : vector<1x512xi32> to vector<1x512xf32>
    %38 = arith.addf %32, %37 : vector<1x512xf32>
    %39 = vector.extract_strided_slice %25 {offsets = [0, 2], sizes = [1, 1], strides = [1, 1]} : vector<1x4xi32> to vector<1x1xi32>
    %40 = vector.broadcast %39 : vector<1x1xi32> to vector<1x512xi32>
    %41 = arith.cmpi eq, %5, %40 : vector<1x512xi32>
    %42 = arith.extui %41 : vector<1x512xi1> to vector<1x512xi32>
    %43 = arith.sitofp %42 : vector<1x512xi32> to vector<1x512xf32>
    %44 = arith.addf %38, %43 : vector<1x512xf32>
    %45 = vector.extract_strided_slice %25 {offsets = [0, 3], sizes = [1, 1], strides = [1, 1]} : vector<1x4xi32> to vector<1x1xi32>
    %46 = vector.broadcast %45 : vector<1x1xi32> to vector<1x512xi32>
    %47 = arith.cmpi eq, %5, %46 : vector<1x512xi32>
    %48 = arith.extui %47 : vector<1x512xi1> to vector<1x512xi32>
    %49 = arith.sitofp %48 : vector<1x512xi32> to vector<1x512xf32>
    %50 = arith.addf %44, %49 : vector<1x512xf32>
    %51 = arith.mulf %18, %50 : vector<1x512xf32>
    %cst_11 = arith.constant dense<0.000000e+00> : vector<1xf32>
    %52 = vector.multi_reduction <add>, %51, %cst_11 [1] : vector<1x512xf32> to vector<1xf32>
    %53 = vector.shape_cast %52 : vector<1xf32> to vector<1x1xf32>
    %54 = arith.addf %21, %53 : vector<1x1xf32>
    %55 = arith.index_cast %c0_i32_2 : i32 to index
    %c0_12 = arith.constant 0 : index
    %c0_13 = arith.constant 0 : index
    %56 = vector.load %arg7[%55, %c0_12, %c0_13] : memref<2x1x1xf32, #tpu.memory_space<vmem>>, vector<1x1x1xf32>
    %57 = vector.shape_cast %56 : vector<1x1x1xf32> to vector<1x1xf32>
    %58 = vector.shape_cast %54 : vector<1x1xf32> to vector<1x1x1xf32>
    tpu.vector_store %arg7[%55, %c0_12, %c0_13], %58 {strides = array<i32>} : memref<2x1x1xf32, #tpu.memory_space<vmem>>, vector<1x1x1xf32>,
    %59 = arith.index_cast %c0_i32_2 : i32 to index
    %c0_14 = arith.constant 0 : index
    %c0_15 = arith.constant 0 : index
    %60 = vector.load %arg8[%59, %c0_14, %c0_15] : memref<2x1x1xf32, #tpu.memory_space<vmem>>, vector<1x1x1xf32>
    %61 = vector.shape_cast %60 : vector<1x1x1xf32> to vector<1x1xf32>
    %62 = arith.index_cast %8 : i32 to index
    %c0_16 = arith.constant 0 : index
    %63 = vector.load %arg4[%62, %c0_16] : memref<2x4xi32, #tpu.memory_space<vmem>>, vector<1x4xi32>
    %64 = vector.broadcast %4 : i32 to vector<1x4xi32>
    %65 = arith.subi %63, %64 : vector<1x4xi32>
    %cst_17 = arith.constant 0.000000e+00 : f32
    %66 = vector.broadcast %cst_17 : f32 to vector<1x512xf32>
    %67 = vector.extract_strided_slice %65 {offsets = [0, 0], sizes = [1, 1], strides = [1, 1]} : vector<1x4xi32> to vector<1x1xi32>
    %68 = vector.broadcast %67 : vector<1x1xi32> to vector<1x512xi32>
    %69 = arith.cmpi eq, %5, %68 : vector<1x512xi32>
    %70 = arith.extui %69 : vector<1x512xi1> to vector<1x512xi32>
    %71 = arith.sitofp %70 : vector<1x512xi32> to vector<1x512xf32>
    %72 = arith.addf %66, %71 : vector<1x512xf32>
    %73 = vector.extract_strided_slice %65 {offsets = [0, 1], sizes = [1, 1], strides = [1, 1]} : vector<1x4xi32> to vector<1x1xi32>
    %74 = vector.broadcast %73 : vector<1x1xi32> to vector<1x512xi32>
    %75 = arith.cmpi eq, %5, %74 : vector<1x512xi32>
    %76 = arith.extui %75 : vector<1x512xi1> to vector<1x512xi32>
    %77 = arith.sitofp %76 : vector<1x512xi32> to vector<1x512xf32>
    %78 = arith.addf %72, %77 : vector<1x512xf32>
    %79 = vector.extract_strided_slice %65 {offsets = [0, 2], sizes = [1, 1], strides = [1, 1]} : vector<1x4xi32> to vector<1x1xi32>
    %80 = vector.broadcast %79 : vector<1x1xi32> to vector<1x512xi32>
    %81 = arith.cmpi eq, %5, %80 : vector<1x512xi32>
    %82 = arith.extui %81 : vector<1x512xi1> to vector<1x512xi32>
    %83 = arith.sitofp %82 : vector<1x512xi32> to vector<1x512xf32>
    %84 = arith.addf %78, %83 : vector<1x512xf32>
    %85 = vector.extract_strided_slice %65 {offsets = [0, 3], sizes = [1, 1], strides = [1, 1]} : vector<1x4xi32> to vector<1x1xi32>
    %86 = vector.broadcast %85 : vector<1x1xi32> to vector<1x512xi32>
    %87 = arith.cmpi eq, %5, %86 : vector<1x512xi32>
    %88 = arith.extui %87 : vector<1x512xi1> to vector<1x512xi32>
    %89 = arith.sitofp %88 : vector<1x512xi32> to vector<1x512xf32>
    %90 = arith.addf %84, %89 : vector<1x512xf32>
    %91 = arith.mulf %18, %90 : vector<1x512xf32>
    %cst_18 = arith.constant dense<0.000000e+00> : vector<1xf32>
    %92 = vector.multi_reduction <add>, %91, %cst_18 [1] : vector<1x512xf32> to vector<1xf32>
    %93 = vector.shape_cast %92 : vector<1xf32> to vector<1x1xf32>
    %94 = arith.addf %61, %93 : vector<1x1xf32>
    %95 = arith.index_cast %c0_i32_2 : i32 to index
    %c0_19 = arith.constant 0 : index
    %c0_20 = arith.constant 0 : index
    %96 = vector.load %arg8[%95, %c0_19, %c0_20] : memref<2x1x1xf32, #tpu.memory_space<vmem>>, vector<1x1x1xf32>
    %97 = vector.shape_cast %96 : vector<1x1x1xf32> to vector<1x1xf32>
    %98 = vector.shape_cast %94 : vector<1x1xf32> to vector<1x1x1xf32>
    tpu.vector_store %arg8[%95, %c0_19, %c0_20], %98 {strides = array<i32>} : memref<2x1x1xf32, #tpu.memory_space<vmem>>, vector<1x1x1xf32>,
    %c1_i32_21 = arith.constant 1 : i32
    %c8_i32_22 = arith.constant 8 : i32
    %99 = arith.muli %c1_i32_21, %c8_i32_22 : i32
    %100 = tpu.assume_multiple %99, 8 : i32
    %c1_i32_23 = arith.constant 1 : i32
    %101 = arith.muli %c1_i32_21, %c1_i32_23 : i32
    %102 = arith.index_cast %100 : i32 to index
    %c0_24 = arith.constant 0 : index
    %103 = vector.load %arg1[%102, %c0_24] : memref<16x64xbf16, #tpu.memory_space<vmem>>, vector<8x64xbf16>
    %cst_25 = arith.constant dense<0.000000e+00> : vector<8x512xf32>
    %104 = tpu.matmul %103, %3, %cst_25 {dimension_numbers = #tpu.dot_dimension_numbers<[1], [0], [0], [1], [0, 0, 1, 1], [], []>} : vector<8x64xbf16>, vector<64x512xbf16>, vector<8x512xf32> -> vector<8x512xf32>
    %cst_26 = arith.constant 0.000000e+00 : f32
    %105 = vector.broadcast %cst_26 : f32 to vector<8x512xf32>
    %106 = arith.maximumf %104, %105 : vector<8x512xf32>
    %cst_27 = arith.constant 1.000000e+00 : f32
    %107 = vector.broadcast %cst_27 : f32 to vector<8x512xf32>
    %108 = arith.addf %107, %106 : vector<8x512xf32>
    %109 = math.log %108 : vector<8x512xf32>
    %110 = vector.shape_cast %109 : vector<8x512xf32> to vector<1x8x512xf32>
    %cst_28 = arith.constant dense<0xFF800000> : vector<1x512xf32>
    %111 = vector.multi_reduction <maximumf>, %110, %cst_28 [1] : vector<1x8x512xf32> to vector<1x512xf32>
    %112 = arith.index_cast %c1_i32_21 : i32 to index
    %c0_29 = arith.constant 0 : index
    %c0_30 = arith.constant 0 : index
    %113 = vector.load %arg7[%112, %c0_29, %c0_30] : memref<2x1x1xf32, #tpu.memory_space<vmem>>, vector<1x1x1xf32>
    %114 = vector.shape_cast %113 : vector<1x1x1xf32> to vector<1x1xf32>
    %115 = arith.index_cast %101 : i32 to index
    %c0_31 = arith.constant 0 : index
    %116 = vector.load %arg3[%115, %c0_31] : memref<2x4xi32, #tpu.memory_space<vmem>>, vector<1x4xi32>
    %117 = vector.broadcast %4 : i32 to vector<1x4xi32>
    %118 = arith.subi %116, %117 : vector<1x4xi32>
    %cst_32 = arith.constant 0.000000e+00 : f32
    %119 = vector.broadcast %cst_32 : f32 to vector<1x512xf32>
    %120 = vector.extract_strided_slice %118 {offsets = [0, 0], sizes = [1, 1], strides = [1, 1]} : vector<1x4xi32> to vector<1x1xi32>
    %121 = vector.broadcast %120 : vector<1x1xi32> to vector<1x512xi32>
    %122 = arith.cmpi eq, %5, %121 : vector<1x512xi32>
    %123 = arith.extui %122 : vector<1x512xi1> to vector<1x512xi32>
    %124 = arith.sitofp %123 : vector<1x512xi32> to vector<1x512xf32>
    %125 = arith.addf %119, %124 : vector<1x512xf32>
    %126 = vector.extract_strided_slice %118 {offsets = [0, 1], sizes = [1, 1], strides = [1, 1]} : vector<1x4xi32> to vector<1x1xi32>
    %127 = vector.broadcast %126 : vector<1x1xi32> to vector<1x512xi32>
    %128 = arith.cmpi eq, %5, %127 : vector<1x512xi32>
    %129 = arith.extui %128 : vector<1x512xi1> to vector<1x512xi32>
    %130 = arith.sitofp %129 : vector<1x512xi32> to vector<1x512xf32>
    %131 = arith.addf %125, %130 : vector<1x512xf32>
    %132 = vector.extract_strided_slice %118 {offsets = [0, 2], sizes = [1, 1], strides = [1, 1]} : vector<1x4xi32> to vector<1x1xi32>
    %133 = vector.broadcast %132 : vector<1x1xi32> to vector<1x512xi32>
    %134 = arith.cmpi eq, %5, %133 : vector<1x512xi32>
    %135 = arith.extui %134 : vector<1x512xi1> to vector<1x512xi32>
    %136 = arith.sitofp %135 : vector<1x512xi32> to vector<1x512xf32>
    %137 = arith.addf %131, %136 : vector<1x512xf32>
    %138 = vector.extract_strided_slice %118 {offsets = [0, 3], sizes = [1, 1], strides = [1, 1]} : vector<1x4xi32> to vector<1x1xi32>
    %139 = vector.broadcast %138 : vector<1x1xi32> to vector<1x512xi32>
    %140 = arith.cmpi eq, %5, %139 : vector<1x512xi32>
    %141 = arith.extui %140 : vector<1x512xi1> to vector<1x512xi32>
    %142 = arith.sitofp %141 : vector<1x512xi32> to vector<1x512xf32>
    %143 = arith.addf %137, %142 : vector<1x512xf32>
    %144 = arith.mulf %111, %143 : vector<1x512xf32>
    %cst_33 = arith.constant dense<0.000000e+00> : vector<1xf32>
    %145 = vector.multi_reduction <add>, %144, %cst_33 [1] : vector<1x512xf32> to vector<1xf32>
    %146 = vector.shape_cast %145 : vector<1xf32> to vector<1x1xf32>
    %147 = arith.addf %114, %146 : vector<1x1xf32>
    %148 = arith.index_cast %c1_i32_21 : i32 to index
    %c0_34 = arith.constant 0 : index
    %c0_35 = arith.constant 0 : index
    %149 = vector.load %arg7[%148, %c0_34, %c0_35] : memref<2x1x1xf32, #tpu.memory_space<vmem>>, vector<1x1x1xf32>
    %150 = vector.shape_cast %149 : vector<1x1x1xf32> to vector<1x1xf32>
    %151 = vector.shape_cast %147 : vector<1x1xf32> to vector<1x1x1xf32>
    tpu.vector_store %arg7[%148, %c0_34, %c0_35], %151 {strides = array<i32>} : memref<2x1x1xf32, #tpu.memory_space<vmem>>, vector<1x1x1xf32>,
    %152 = arith.index_cast %c1_i32_21 : i32 to index
    %c0_36 = arith.constant 0 : index
    %c0_37 = arith.constant 0 : index
    %153 = vector.load %arg8[%152, %c0_36, %c0_37] : memref<2x1x1xf32, #tpu.memory_space<vmem>>, vector<1x1x1xf32>
    %154 = vector.shape_cast %153 : vector<1x1x1xf32> to vector<1x1xf32>
    %155 = arith.index_cast %101 : i32 to index
    %c0_38 = arith.constant 0 : index
    %156 = vector.load %arg4[%155, %c0_38] : memref<2x4xi32, #tpu.memory_space<vmem>>, vector<1x4xi32>
    %157 = vector.broadcast %4 : i32 to vector<1x4xi32>
    %158 = arith.subi %156, %157 : vector<1x4xi32>
    %cst_39 = arith.constant 0.000000e+00 : f32
    %159 = vector.broadcast %cst_39 : f32 to vector<1x512xf32>
    %160 = vector.extract_strided_slice %158 {offsets = [0, 0], sizes = [1, 1], strides = [1, 1]} : vector<1x4xi32> to vector<1x1xi32>
    %161 = vector.broadcast %160 : vector<1x1xi32> to vector<1x512xi32>
    %162 = arith.cmpi eq, %5, %161 : vector<1x512xi32>
    %163 = arith.extui %162 : vector<1x512xi1> to vector<1x512xi32>
    %164 = arith.sitofp %163 : vector<1x512xi32> to vector<1x512xf32>
    %165 = arith.addf %159, %164 : vector<1x512xf32>
    %166 = vector.extract_strided_slice %158 {offsets = [0, 1], sizes = [1, 1], strides = [1, 1]} : vector<1x4xi32> to vector<1x1xi32>
    %167 = vector.broadcast %166 : vector<1x1xi32> to vector<1x512xi32>
    %168 = arith.cmpi eq, %5, %167 : vector<1x512xi32>
    %169 = arith.extui %168 : vector<1x512xi1> to vector<1x512xi32>
    %170 = arith.sitofp %169 : vector<1x512xi32> to vector<1x512xf32>
    %171 = arith.addf %165, %170 : vector<1x512xf32>
    %172 = vector.extract_strided_slice %158 {offsets = [0, 2], sizes = [1, 1], strides = [1, 1]} : vector<1x4xi32> to vector<1x1xi32>
    %173 = vector.broadcast %172 : vector<1x1xi32> to vector<1x512xi32>
    %174 = arith.cmpi eq, %5, %173 : vector<1x512xi32>
    %175 = arith.extui %174 : vector<1x512xi1> to vector<1x512xi32>
    %176 = arith.sitofp %175 : vector<1x512xi32> to vector<1x512xf32>
    %177 = arith.addf %171, %176 : vector<1x512xf32>
    %178 = vector.extract_strided_slice %158 {offsets = [0, 3], sizes = [1, 1], strides = [1, 1]} : vector<1x4xi32> to vector<1x1xi32>
    %179 = vector.broadcast %178 : vector<1x1xi32> to vector<1x512xi32>
    %180 = arith.cmpi eq, %5, %179 : vector<1x512xi32>
    %181 = arith.extui %180 : vector<1x512xi1> to vector<1x512xi32>
    %182 = arith.sitofp %181 : vector<1x512xi32> to vector<1x512xf32>
    %183 = arith.addf %177, %182 : vector<1x512xf32>
    %184 = arith.mulf %111, %183 : vector<1x512xf32>
    %cst_40 = arith.constant dense<0.000000e+00> : vector<1xf32>
    %185 = vector.multi_reduction <add>, %184, %cst_40 [1] : vector<1x512xf32> to vector<1xf32>
    %186 = vector.shape_cast %185 : vector<1xf32> to vector<1x1xf32>
    %187 = arith.addf %154, %186 : vector<1x1xf32>
    %188 = arith.index_cast %c1_i32_21 : i32 to index
    %c0_41 = arith.constant 0 : index
    %c0_42 = arith.constant 0 : index
    %189 = vector.load %arg8[%188, %c0_41, %c0_42] : memref<2x1x1xf32, #tpu.memory_space<vmem>>, vector<1x1x1xf32>
    %190 = vector.shape_cast %189 : vector<1x1x1xf32> to vector<1x1xf32>
    %191 = vector.shape_cast %187 : vector<1x1xf32> to vector<1x1x1xf32>
    tpu.vector_store %arg8[%188, %c0_41, %c0_42], %191 {strides = array<i32>} : memref<2x1x1xf32, #tpu.memory_space<vmem>>, vector<1x1x1xf32>,
    %c2_i32 = arith.constant 2 : i32
    %c1_i32_43 = arith.constant 1 : i32
    %192 = arith.cmpi eq, %arg0, %c1_i32_43 : i32
    %193 = arith.extui %192 : i1 to i32
    %c0_i32_44 = arith.constant 0 : i32
    %194 = arith.cmpi ne, %193, %c0_i32_44 : i32
    scf.if %194 {
      %c0_45 = arith.constant 0 : index
      %c0_46 = arith.constant 0 : index
      %c0_47 = arith.constant 0 : index
      %195 = vector.load %arg7[%c0_45, %c0_46, %c0_47] : memref<2x1x1xf32, #tpu.memory_space<vmem>>, vector<2x1x1xf32>
      %196 = vector.shape_cast %195 : vector<2x1x1xf32> to vector<2x1xf32>
      %c0_48 = arith.constant 0 : index
      %c0_49 = arith.constant 0 : index
      %c0_50 = arith.constant 0 : index
      %197 = vector.load %arg8[%c0_48, %c0_49, %c0_50] : memref<2x1x1xf32, #tpu.memory_space<vmem>>, vector<2x1x1xf32>
      %198 = vector.shape_cast %197 : vector<2x1x1xf32> to vector<2x1xf32>
      %199 = arith.subf %196, %198 : vector<2x1xf32>
      %c0_51 = arith.constant 0 : index
      %c0_52 = arith.constant 0 : index
      %200 = vector.load %arg5[%c0_51, %c0_52] : memref<2x1xf32, #tpu.memory_space<vmem>>, vector<2x1xf32>
      %201 = arith.subf %199, %200 : vector<2x1xf32>
      %202 = arith.mulf %201, %201 : vector<2x1xf32>
      %203 = vector.shape_cast %202 : vector<2x1xf32> to vector<1x2x1xf32>
      %cst_53 = arith.constant dense<0.000000e+00> : vector<1xf32>
      %204 = vector.multi_reduction <add>, %203, %cst_53 [1, 2] : vector<1x2x1xf32> to vector<1xf32>
      %205 = vector.shape_cast %204 : vector<1xf32> to vector<1x1x1xf32>
      %206 = vector.extract %205[0, 0, 0] : f32 from vector<1x1x1xf32>
      %207 = vector.broadcast %206 : f32 to vector<1x1xf32>
      %cst_54 = arith.constant 5.000000e-01 : f32
      %208 = vector.broadcast %cst_54 : f32 to vector<1x1xf32>
      %209 = arith.mulf %207, %208 : vector<1x1xf32>
      %c0_55 = arith.constant 0 : index
      %c0_56 = arith.constant 0 : index
      %210 = vector.load %arg6[%c0_55, %c0_56] : memref<1x1xf32, #tpu.memory_space<vmem>>, vector<1x1xf32>
      tpu.vector_store %arg6[%c0_55, %c0_56], %209 {strides = array<i32>} : memref<1x1xf32, #tpu.memory_space<vmem>>, vector<1x1xf32>,
    } else {
    }
    return
  }
  func.func @transform_0(%arg0: i32) -> (i32, i32) {
    %c0_i32 = arith.constant 0 : i32
    %c0_i32_0 = arith.constant 0 : i32
    %c0_i32_1 = arith.constant 0 : i32
    return %c0_i32, %c0_i32_0 : i32, i32
  }
  func.func @transform_1(%arg0: i32) -> (i32, i32) {
    %c0_i32 = arith.constant 0 : i32
    %c0_i32_0 = arith.constant 0 : i32
    return %c0_i32, %arg0 : i32, i32
  }
  func.func @transform_2(%arg0: i32) -> (i32, i32) {
    %c0_i32 = arith.constant 0 : i32
    %c0_i32_0 = arith.constant 0 : i32
    %c0_i32_1 = arith.constant 0 : i32
    return %c0_i32, %c0_i32_0 : i32, i32
  }
  func.func @transform_3(%arg0: i32) -> (i32, i32) {
    %c0_i32 = arith.constant 0 : i32
    %c0_i32_0 = arith.constant 0 : i32
    %c0_i32_1 = arith.constant 0 : i32
    return %c0_i32, %c0_i32_0 : i32, i32
  }
  func.func @transform_4(%arg0: i32) -> (i32, i32) {
    %c0_i32 = arith.constant 0 : i32
    %c0_i32_0 = arith.constant 0 : i32
    %c0_i32_1 = arith.constant 0 : i32
    return %c0_i32, %c0_i32_0 : i32, i32
  }
  func.func @transform_5(%arg0: i32) -> (i32, i32) {
    %c0_i32 = arith.constant 0 : i32
    %c0_i32_0 = arith.constant 0 : i32
    %c0_i32_1 = arith.constant 0 : i32
    return %c0_i32, %c0_i32_0 : i32, i32
  }
}

</mosaic_0001>

<llo_original>
// kernel: tpu_custom_call.1
$region0: #{tpu_custom_call.1}
  #allocation0 [shape = 'u32[]', space=smem, size = 0x4, offset = 0x4, fixed_abs, tag = 'smem constant byte address 0x4 - core index']
  #allocation1 [shape = 'u32[144,128]{1,0:T(1,128)}', space=vmem, size = 0x12000, scoped, tag = 'internal scratch']
  #allocation2 [shape = 'f32[2,1,1]{2,1,0:T(1,128)}', space=vmem, size = 0x400, scoped, tag = 'scratch operand']
  #allocation3 [shape = 'f32[2,1,1]{2,1,0:T(1,128)}', space=vmem, size = 0x400, scoped, tag = 'scratch operand']
  %s0 = inlined_call_operand.hbm [shape: bf16[16,64], index: 0, kind: input, shape index: {}]
  %s1 = inlined_call_operand.hbm [shape: bf16[64,1024], index: 1, kind: input, shape index: {}]
  %s2 = inlined_call_operand.hbm [shape: s32[2,4], index: 2, kind: input, shape index: {}]
  %s3 = inlined_call_operand.hbm [shape: s32[2,4], index: 3, kind: input, shape index: {}]
  %s4 = inlined_call_operand.hbm [shape: f32[2,1], index: 4, kind: input, shape index: {}]
  %s5 = inlined_call_operand.hbm [shape: f32[1,1], index: 5, kind: output, shape index: {}]
  %s6 = sld [smem:[#allocation0]]
  $region81: #{tpu_custom_call.1} parent=0
    _
  %s8 = ssub.s32 1, %s6
  %s9 = scalar_select 0, %s8, %s6
  $region1: #{tpu_custom_call.1} parent=0
    #allocation4 [shape = 'u8[4096]{0}', space=vmem, size = 0x1000, scoped, tag = 'input window, operand 0, single buffered']
    #allocation5 [shape = 's32[2]{0}', space=sflag, size = 0x8, scoped, tag = 'scoped memory for tpu_custom_call.1']
    #allocation6 [shape = 's32[2]{0}', space=sflag, size = 0x8, scoped, tag = 'scoped memory for tpu_custom_call.1']
    #allocation7 [shape = 'u8[131072]{0}', space=vmem, size = 0x20000, scoped, tag = 'input window, operand 1']
    #allocation8 [shape = 's32[2]{0}', space=sflag, size = 0x8, scoped, tag = 'scoped memory for tpu_custom_call.1']
    #allocation9 [shape = 'u8[1024]{0}', space=vmem, size = 0x400, scoped, tag = 'input window, operand 2, single buffered']
    #allocation10 [shape = 'u8[1024]{0}', space=vmem, size = 0x400, scoped, tag = 'input window, operand 3, single buffered']
    #allocation11 [shape = 's32[1]{0}', space=sflag, size = 0x4, scoped, tag = 'scoped memory for tpu_custom_call.1']
    #allocation12 [shape = 'u8[1024]{0}', space=vmem, size = 0x400, scoped, tag = 'input window, operand 4, single buffered']
    #allocation13 [shape = 'u8[512]{0}', space=vmem, size = 0x400, scoped, tag = 'output window, operand 0, single buffered']
    %10 = vsyncpa [#allocation5], 0
    %11 = vsyncpa [#allocation8], 0
    %s12 = scalar_lea.sflag [#allocation8], 1
    %13 = vsyncpa %s12, 0
    %14 = vsyncpa [#allocation11], 0
    %15 = vsyncpa [#allocation6], 0
    loop: start=0, step=1, limit=4
    $region2: #{tpu_custom_call.1} parent=1 // loop_pre_header
      _
    $region3: #{tpu_custom_call.1} parent=1 // loop_header
      %s17 = sphi 0, %s21
      %p18 = scmp.ge.s32.totalorder %s17, 4
      %s25 = sphi 0, %s25
      %s27 = sphi 0, %s25
      %s28 = sphi 0, %s27
      %s42 = sphi 0, %s28
      %s48 = sphi 0, %s50
      %s51 = sphi 0, %s48
      %s52 = sphi 0, %s51
      %s68 = sphi 0, %s52
      %s72 = sphi 0, %s72
      %s74 = sphi 0, %s72
      %s75 = sphi 0, %s74
      %s89 = sphi 0, %s75
      %s93 = sphi 0, %s93
      %s95 = sphi 0, %s93
      %s96 = sphi 0, %s95
      %s110 = sphi 0, %s96
      %s114 = sphi 0, %s114
      %s116 = sphi 0, %s114
      %s117 = sphi 0, %s116
      %s131 = sphi 0, %s117
      %s135 = sphi 0, %s135
      %s137 = sphi 0, %s135
      %s138 = sphi 0, %s137
      %s152 = sphi 0, %s138
    $region4: #{tpu_custom_call.1} parent=1 // loop_header_branch
      %20 = sbr.rel (%p18) target = $region8
    $region5: #{tpu_custom_call.1} parent=1 // loop_body
      %s22 = ssub.s32 %s17, 1
      %s23 = ssub.s32 %s17, 2
      %s24 = sadd.s32 %s17, 1
      %s26 = sadd.s32 %s25, 1
      %p29 = scmp.eq.s32.totalorder %s17, 1
      %p30 = scmp.ne.s32.totalorder %s25, %s27
      %p31 = scmp.eq.s32.totalorder %s17, 0
      %p32 = por %p30, %p31
      %p33 = scmp.ne.s32.totalorder %s25, %s27
      %p34 = scmp.eq.s32.totalorder %s22, 1
      %p35 = por %p33, %p34
      %p36 = scmp.ne.s32.totalorder %s27, %s28
      %p37 = scmp.eq.s32.totalorder %s22, 0
      %p38 = por %p36, %p37
      %p39 = scmp.ne.s32.totalorder %s27, %s28
      %p40 = scmp.eq.s32.totalorder %s23, 1
      %p41 = por %p39, %p40
      %p43 = scmp.ne.s32.totalorder %s28, %s42
      %p44 = scmp.eq.s32.totalorder %s23, 0
      %p45 = por %p43, %p44
      %s46 = ssub.s32 %s17, %s24
      %p47 = scmp.eq.s32.totalorder %s46, 0
      %s49 = sadd.s32 %s48, 1
      %s50 = scalar_select %p47, %s48, %s49
      %p53 = pneg %p47
      %p54 = scmp.eq.s32.totalorder %s17, 1
      %p55 = por %p53, %p54
      %p56 = scmp.ne.s32.totalorder %s48, %s51
      %p57 = scmp.eq.s32.totalorder %s17, 0
      %p58 = por %p56, %p57
      %p59 = scmp.ne.s32.totalorder %s48, %s51
      %p60 = scmp.eq.s32.totalorder %s22, 1
      %p61 = por %p59, %p60
      %p62 = scmp.ne.s32.totalorder %s51, %s52
      %p63 = scmp.eq.s32.totalorder %s22, 0
      %p64 = por %p62, %p63
      %p65 = scmp.ne.s32.totalorder %s51, %s52
      %p66 = scmp.eq.s32.totalorder %s23, 1
      %p67 = por %p65, %p66
      %p69 = scmp.ne.s32.totalorder %s52, %s68
      %p70 = scmp.eq.s32.totalorder %s23, 0
      %p71 = por %p69, %p70
      %s73 = sadd.s32 %s72, 1
      %p76 = scmp.eq.s32.totalorder %s17, 1
      %p77 = scmp.ne.s32.totalorder %s72, %s74
      %p78 = scmp.eq.s32.totalorder %s17, 0
      %p79 = por %p77, %p78
      %p80 = scmp.ne.s32.totalorder %s72, %s74
      %p81 = scmp.eq.s32.totalorder %s22, 1
      %p82 = por %p80, %p81
      %p83 = scmp.ne.s32.totalorder %s74, %s75
      %p84 = scmp.eq.s32.totalorder %s22, 0
      %p85 = por %p83, %p84
      %p86 = scmp.ne.s32.totalorder %s74, %s75
      %p87 = scmp.eq.s32.totalorder %s23, 1
      %p88 = por %p86, %p87
      %p90 = scmp.ne.s32.totalorder %s75, %s89
      %p91 = scmp.eq.s32.totalorder %s23, 0
      %p92 = por %p90, %p91
      %s94 = sadd.s32 %s93, 1
      %p97 = scmp.eq.s32.totalorder %s17, 1
      %p98 = scmp.ne.s32.totalorder %s93, %s95
      %p99 = scmp.eq.s32.totalorder %s17, 0
      %p100 = por %p98, %p99
      %p101 = scmp.ne.s32.totalorder %s93, %s95
      %p102 = scmp.eq.s32.totalorder %s22, 1
      %p103 = por %p101, %p102
      %p104 = scmp.ne.s32.totalorder %s95, %s96
      %p105 = scmp.eq.s32.totalorder %s22, 0
      %p106 = por %p104, %p105
      %p107 = scmp.ne.s32.totalorder %s95, %s96
      %p108 = scmp.eq.s32.totalorder %s23, 1
      %p109 = por %p107, %p108
      %p111 = scmp.ne.s32.totalorder %s96, %s110
      %p112 = scmp.eq.s32.totalorder %s23, 0
      %p113 = por %p111, %p112
      %s115 = sadd.s32 %s114, 1
      %p118 = scmp.eq.s32.totalorder %s17, 1
      %p119 = scmp.ne.s32.totalorder %s114, %s116
      %p120 = scmp.eq.s32.totalorder %s17, 0
      %p121 = por %p119, %p120
      %p122 = scmp.ne.s32.totalorder %s114, %s116
      %p123 = scmp.eq.s32.totalorder %s22, 1
      %p124 = por %p122, %p123
      %p125 = scmp.ne.s32.totalorder %s116, %s117
      %p126 = scmp.eq.s32.totalorder %s22, 0
      %p127 = por %p125, %p126
      %p128 = scmp.ne.s32.totalorder %s116, %s117
      %p129 = scmp.eq.s32.totalorder %s23, 1
      %p130 = por %p128, %p129
      %p132 = scmp.ne.s32.totalorder %s117, %s131
      %p133 = scmp.eq.s32.totalorder %s23, 0
      %p134 = por %p132, %p133
      %s136 = sadd.s32 %s135, 1
      %p139 = scmp.eq.s32.totalorder %s17, 1
      %p140 = scmp.ne.s32.totalorder %s135, %s137
      %p141 = scmp.eq.s32.totalorder %s17, 0
      %p142 = por %p140, %p141
      %p143 = scmp.ne.s32.totalorder %s135, %s137
      %p144 = scmp.eq.s32.totalorder %s22, 1
      %p145 = por %p143, %p144
      %p146 = scmp.ne.s32.totalorder %s137, %s138
      %p147 = scmp.eq.s32.totalorder %s22, 0
      %p148 = por %p146, %p147
      %p149 = scmp.ne.s32.totalorder %s137, %s138
      %p150 = scmp.eq.s32.totalorder %s23, 1
      %p151 = por %p149, %p150
      %p153 = scmp.ne.s32.totalorder %s138, %s152
      %p154 = scmp.eq.s32.totalorder %s23, 0
      %p155 = por %p153, %p154
      %p156 = scmp.le.s32.totalorder 1, %s17
      %p157 = scmp.lt.s32.totalorder %s17, 3
      %p158 = pnand %p156, %p157
      %p159 = pneg %p158
      // Predicated region
      $region9: #{tpu_custom_call.1} parent=5 // pred_check
        _
      $region10: #{tpu_custom_call.1} parent=5 // pred_check_branch
        %161 = sbr.rel (%p158) target = $region12
      $region11: #{tpu_custom_call.1} parent=5 // pred_region
        %s162 = ssub.s32 %s17, 1
        // Predicated region
        $region13: #{tpu_custom_call.1} parent=11 // pred_check
          %p163 = pneg %p38
        $region14: #{tpu_custom_call.1} parent=11 // pred_check_branch
          %165 = sbr.rel (%p163) target = $region16
        $region15: #{tpu_custom_call.1} parent=11 // pred_region
          %s167 = ssub.s32 128, 128
          %168 = vsyncadd [#allocation5], %s167
          %s169 = sshll.u32 [#allocation4], 4
          %s170 = int_to_ptr.vmem [resolvable:$true] %s169
          %175 = dma.hbm_to_vmem [thread:$0]  %s0, 128, %s170, [#allocation5], 64, 64, 4
        $region16: #{tpu_custom_call.1} parent=11 // pred_fallthru
          _
        // Predicated region
        $region17: #{tpu_custom_call.1} parent=11 // pred_check
          %p176 = pneg %p85
        $region18: #{tpu_custom_call.1} parent=11 // pred_check_branch
          %178 = sbr.rel (%p176) target = $region20
        $region19: #{tpu_custom_call.1} parent=11 // pred_region
          %s180 = ssub.s32 32, 32
          %181 = vsyncadd [#allocation8], %s180
          %s183 = sshll.u32 [#allocation9], 4
          %s184 = int_to_ptr.vmem [resolvable:$true] %s183
          %186 = dma.hbm_to_vmem [thread:$0]  %s2, 32, %s184, [#allocation8]
        $region20: #{tpu_custom_call.1} parent=11 // pred_fallthru
          _
        // Predicated region
        $region21: #{tpu_custom_call.1} parent=11 // pred_check
          %p187 = pneg %p106
        $region22: #{tpu_custom_call.1} parent=11 // pred_check_branch
          %189 = sbr.rel (%p187) target = $region24
        $region23: #{tpu_custom_call.1} parent=11 // pred_region
          %s191 = ssub.s32 32, 32
          %192 = vsyncadd [#allocation11], %s191
          %s194 = sshll.u32 [#allocation10], 4
          %s195 = int_to_ptr.vmem [resolvable:$true] %s194
          %197 = dma.hbm_to_vmem [thread:$0]  %s3, 32, %s195, [#allocation11]
        $region24: #{tpu_custom_call.1} parent=11 // pred_fallthru
          _
        // Predicated region
        $region25: #{tpu_custom_call.1} parent=11 // pred_check
          %p198 = pneg %p127
        $region26: #{tpu_custom_call.1} parent=11 // pred_check_branch
          %200 = sbr.rel (%p198) target = $region28
        $region27: #{tpu_custom_call.1} parent=11 // pred_region
          %s202 = ssub.s32 32, 32
          %203 = vsyncadd [#allocation11], %s202
          %s205 = sshll.u32 [#allocation12], 4
          %s206 = int_to_ptr.vmem [resolvable:$true] %s205
          %208 = dma.hbm_to_vmem [thread:$0]  %s4, 32, %s206, [#allocation11]
        $region28: #{tpu_custom_call.1} parent=11 // pred_fallthru
          _
      $region12: #{tpu_custom_call.1} parent=5 // pred_fallthru
        _
      %p209 = scmp.lt.s32.totalorder %s17, 2
      // Predicated region
      $region29: #{tpu_custom_call.1} parent=5 // pred_check
        %p210 = pneg %p209
      $region30: #{tpu_custom_call.1} parent=5 // pred_check_branch
        %212 = sbr.rel (%p210) target = $region32
      $region31: #{tpu_custom_call.1} parent=5 // pred_region
        // Predicated region
        $region33: #{tpu_custom_call.1} parent=31 // pred_check
          %p213 = pneg %p58
        $region34: #{tpu_custom_call.1} parent=31 // pred_check_branch
          %215 = sbr.rel (%p213) target = $region36
        $region35: #{tpu_custom_call.1} parent=31 // pred_region
          %s216 = sand.u32 %s17, 1
          %s217 = scalar_lea.sflag [#allocation8], %s216
          %s218 = sand.u32 %s48, 1
          %s219 = smul.addr %s218, 128
          %s220 = scalar_lea.vmem [#allocation7], %s219
          %s221 = smul.u32 4, %s17
          %s223 = ssub.s32 2048, 2048
          %224 = vsyncadd %s217, %s223
          %s225 = smul.addr %s221, 64
          %s226 = scalar_lea.hbm %s1, %s225
          %s227 = sshll.u32 %s220, 4
          %s228 = int_to_ptr.vmem [resolvable:$true] %s227
          %233 = dma.hbm_to_vmem [thread:$0]  %s226, 2048, %s228, %s217, 512, 256, 16
        $region36: #{tpu_custom_call.1} parent=31 // pred_fallthru
          _
      $region32: #{tpu_custom_call.1} parent=5 // pred_fallthru
        _
      %p234 = scmp.le.s32.totalorder 1, %s17
      %p235 = scmp.lt.s32.totalorder %s17, 3
      %p236 = pnand %p234, %p235
      %p237 = pneg %p236
      // Predicated region
      $region37: #{tpu_custom_call.1} parent=5 // pred_check
        _
      $region38: #{tpu_custom_call.1} parent=5 // pred_check_branch
        %239 = sbr.rel (%p236) target = $region40
      $region39: #{tpu_custom_call.1} parent=5 // pred_region
        %s240 = ssub.s32 %s17, 1
        // Predicated region
        $region41: #{tpu_custom_call.1} parent=39 // pred_check
          %p241 = pneg %p38
        $region42: #{tpu_custom_call.1} parent=39 // pred_check_branch
          %243 = sbr.rel (%p241) target = $region44
        $region43: #{tpu_custom_call.1} parent=39 // pred_region
          %244 = dma.done [#allocation5], 128
        $region44: #{tpu_custom_call.1} parent=39 // pred_fallthru
          _
        %s245 = sand.u32 %s22, 1
        %s246 = scalar_lea.sflag [#allocation8], %s245
        %s247 = sand.u32 %s51, 1
        %s248 = smul.addr %s247, 128
        %s249 = scalar_lea.vmem [#allocation7], %s248
        // Predicated region
        $region45: #{tpu_custom_call.1} parent=39 // pred_check
          %p250 = pneg %p64
        $region46: #{tpu_custom_call.1} parent=39 // pred_check_branch
          %252 = sbr.rel (%p250) target = $region48
        $region47: #{tpu_custom_call.1} parent=39 // pred_region
          %253 = dma.done %s246, 2048
        $region48: #{tpu_custom_call.1} parent=39 // pred_fallthru
          _
        // Predicated region
        $region49: #{tpu_custom_call.1} parent=39 // pred_check
          %p254 = pneg %p85
        $region50: #{tpu_custom_call.1} parent=39 // pred_check_branch
          %256 = sbr.rel (%p254) target = $region52
        $region51: #{tpu_custom_call.1} parent=39 // pred_region
          %257 = dma.done [#allocation8], 32
        $region52: #{tpu_custom_call.1} parent=39 // pred_fallthru
          _
        // Predicated region
        $region53: #{tpu_custom_call.1} parent=39 // pred_check
          %p258 = pneg %p106
        $region54: #{tpu_custom_call.1} parent=39 // pred_check_branch
          %260 = sbr.rel (%p258) target = $region56
        $region55: #{tpu_custom_call.1} parent=39 // pred_region
          %261 = dma.done [#allocation11], 32
        $region56: #{tpu_custom_call.1} parent=39 // pred_fallthru
          _
        // Predicated region
        $region57: #{tpu_custom_call.1} parent=39 // pred_check
          %p262 = pneg %p127
        $region58: #{tpu_custom_call.1} parent=39 // pred_check_branch
          %264 = sbr.rel (%p262) target = $region60
        $region59: #{tpu_custom_call.1} parent=39 // pred_region
          %265 = dma.done [#allocation11], 32
        $region60: #{tpu_custom_call.1} parent=39 // pred_fallthru
          _
        %p266 = pneg %p38
        %p267 = pneg %p35
        %s268 = sand.u32 %s22, 1
        %s269 = scalar_lea.sflag [#allocation8], %s268
        %s270 = sand.u32 %s51, 1
        %s271 = smul.addr %s270, 128
        %s272 = scalar_lea.vmem [#allocation7], %s271
        %p273 = pneg %p64
        %p274 = pneg %p61
        %p275 = pneg %p85
        %p276 = pneg %p82
        %p277 = pneg %p106
        %p278 = pneg %p103
        %p279 = pneg %p127
        %p280 = pneg %p124
        %p281 = pneg %p148
        %p282 = pneg %p145
        %s283 = smul.u32 4, %s22
        %p285 = scmp.eq.s32.totalorder %s22, 0
        // Predicated region
        $region61: #{tpu_custom_call.1} parent=39 // pred_check
          %p286 = pneg %p285
        $region62: #{tpu_custom_call.1} parent=39 // pred_check_branch
          %288 = sbr.rel (%p286) target = $region64
        $region63: #{tpu_custom_call.1} parent=39 // pred_region
          %vm289 = vcmask 0
          %290 = vst.msk [vmem:[#allocation2] sm:$0x1] %vm289, 0.0
          %291 = vst.msk [vmem:[#allocation2 + $0x1] sm:$0x1] %vm289, 0.0
          %292 = vst.msk [vmem:[#allocation3] sm:$0x1] %vm289, 0.0
          %293 = vst.msk [vmem:[#allocation3 + $0x1] sm:$0x1] %vm289, 0.0
        $region64: #{tpu_custom_call.1} parent=39 // pred_fallthru
          _
        %v294 = vld [vmem:[%s249] sm:$0xff]
        %v295 = vld [vmem:[%s249 + $0x8] sm:$0xff]
        %v296 = vld [vmem:[%s249 + $0x10] sm:$0xff]
        %v297 = vld [vmem:[%s249 + $0x18] sm:$0xff]
        %v298 = vld [vmem:[%s249 + $0x20] sm:$0xff]
        %v299 = vld [vmem:[%s249 + $0x28] sm:$0xff]
        %v300 = vld [vmem:[%s249 + $0x30] sm:$0xff]
        %v301 = vld [vmem:[%s249 + $0x38] sm:$0xff]
        %v302 = vld [vmem:[%s249 + $0x40] sm:$0xff]
        %v303 = vld [vmem:[%s249 + $0x48] sm:$0xff]
        %v304 = vld [vmem:[%s249 + $0x50] sm:$0xff]
        %v305 = vld [vmem:[%s249 + $0x58] sm:$0xff]
        %v306 = vld [vmem:[%s249 + $0x60] sm:$0xff]
        %v307 = vld [vmem:[%s249 + $0x68] sm:$0xff]
        %v308 = vld [vmem:[%s249 + $0x70] sm:$0xff]
        %v309 = vld [vmem:[%s249 + $0x78] sm:$0xff]
        %s310 = smul.u32 %s22, 512
        %v311 = vlaneseq
        %v312 = vand.u32 %v311, 127
        %v313 = vadd.s32 %v312, 128
        %v314 = vadd.s32 %v312, 256
        %v315 = vadd.s32 %v312, 384
        %v316 = vld [vmem:[#allocation4] sm:$0xf]
        %v333 = vunpack.c.l.b16 %v294
        %v334 = vunpack.c.h.b16 %v294
        %v335 = vunpack.c.l.b16 %v295
        %v336 = vunpack.c.h.b16 %v295
        %v337 = vunpack.c.l.b16 %v296
        %v338 = vunpack.c.h.b16 %v296
        %v339 = vunpack.c.l.b16 %v297
        %v340 = vunpack.c.h.b16 %v297
        %v341 = vunpack.c.l.b16 %v298
        %v342 = vunpack.c.h.b16 %v298
        %v343 = vunpack.c.l.b16 %v299
        %v344 = vunpack.c.h.b16 %v299
        %v345 = vunpack.c.l.b16 %v300
        %v346 = vunpack.c.h.b16 %v300
        %v347 = vunpack.c.l.b16 %v301
        %v348 = vunpack.c.h.b16 %v301
        %v349 = vunpack.c.l.b16 %v302
        %v350 = vunpack.c.h.b16 %v302
        %v351 = vunpack.c.l.b16 %v303
        %v352 = vunpack.c.h.b16 %v303
        %v353 = vunpack.c.l.b16 %v304
        %v354 = vunpack.c.h.b16 %v304
        %v355 = vunpack.c.l.b16 %v305
        %v356 = vunpack.c.h.b16 %v305
        %v357 = vunpack.c.l.b16 %v306
        %v358 = vunpack.c.h.b16 %v306
        %v359 = vunpack.c.l.b16 %v307
        %v360 = vunpack.c.h.b16 %v307
        %v361 = vunpack.c.l.b16 %v308
        %v362 = vunpack.c.h.b16 %v308
        %v363 = vunpack.c.l.b16 %v309
        %v364 = vunpack.c.h.b16 %v309
        %v365 = vpack.c.b16 %v337, %v333
        %v366 = vpack.c.b16 %v338, %v334
        %v367 = vpack.c.b16 %v339, %v335
        %v368 = vpack.c.b16 %v340, %v336
        %v369 = vpack.c.b16 %v345, %v341
        %v370 = vpack.c.b16 %v346, %v342
        %v371 = vpack.c.b16 %v347, %v343
        %v372 = vpack.c.b16 %v348, %v344
        %v373 = vpack.c.b16 %v353, %v349
        %v374 = vpack.c.b16 %v354, %v350
        %v375 = vpack.c.b16 %v355, %v351
        %v376 = vpack.c.b16 %v356, %v352
        %v377 = vpack.c.b16 %v361, %v357
        %v378 = vpack.c.b16 %v362, %v358
        %v379 = vpack.c.b16 %v363, %v359
        %v380 = vpack.c.b16 %v364, %v360
        %vm397 = vcmask 523264
        %v399 = vsel %vm397, %v316, 0
        %401 = vmatprep.subr.bf16.mxu0 %v366
        %402 = vmatpush1.bf16.msra.mxu0 %v365
        %403 = vmatprep.subr.bf16.mxu0 %v370
        %404 = vmatpush1.bf16.msra.mxu0 %v369
        %405 = vmatprep.subr.bf16.mxu0 %v374
        %406 = vmatpush1.bf16.msra.mxu0 %v373
        %407 = vmatprep.subr.bf16.mxu0 %v378
        %408 = vmatpush1.bf16.msra.mxu0 %v377
        %409 = vmatprep.subr.bf16.mxu0 0
        %410 = vmatpush1.bf16.msra.mxu0 0
        %411 = vmatprep.subr.bf16.mxu0 0
        %412 = vmatpush1.bf16.msra.mxu0 0
        %413 = vmatprep.subr.bf16.mxu0 0
        %414 = vmatpush1.bf16.msra.mxu0 0
        %415 = vmatprep.subr.bf16.mxu0 0
        %416 = vmatpush1.bf16.msra.mxu0 0
        %417 = vmatprep.subr.bf16.mxu0 0
        %418 = vmatpush1.bf16.msra.mxu0 0
        %419 = vmatprep.subr.bf16.mxu0 0
        %420 = vmatpush1.bf16.msra.mxu0 0
        %421 = vmatprep.subr.bf16.mxu0 0
        %422 = vmatpush1.bf16.msra.mxu0 0
        %423 = vmatprep.subr.bf16.mxu0 0
        %424 = vmatpush1.bf16.msra.mxu0 0
        %425 = vmatprep.subr.bf16.mxu0 0
        %426 = vmatpush1.bf16.msra.mxu0 0
        %427 = vmatprep.subr.bf16.mxu0 0
        %428 = vmatpush1.bf16.msra.mxu0 0
        %429 = vmatprep.subr.bf16.mxu0 0
        %430 = vmatpush1.bf16.msra.mxu0 0
        %431 = vmatprep.subr.bf16.mxu0 0
        %432 = vmatpush1.bf16.msra.mxu0 0
        %433 = vmatprep.mubr.bf16.mxu0 0
        %434 = vmatmul.mubr.bf16.gmra.mrb[0].mxu0 %v399
        %v435 = vpop.f32.mrb[0].mxu0
        %v436 = vadd.f32 0.0, %v435
        %v437 = vpop.f32.mrb[0].mxu0
        %v438 = vadd.f32 0.0, %v437
        %v439 = vpop.f32.mrb[0].mxu0
        %v440 = vpop.f32.mrb[0].mxu0
        %441 = vdwg.mxu0
        %442 = vmatprep.subr.bf16.mxu0 %v368
        %443 = vmatpush1.bf16.msra.mxu0 %v367
        %444 = vmatprep.subr.bf16.mxu0 %v372
        %445 = vmatpush1.bf16.msra.mxu0 %v371
        %446 = vmatprep.subr.bf16.mxu0 %v376
        %447 = vmatpush1.bf16.msra.mxu0 %v375
        %448 = vmatprep.subr.bf16.mxu0 %v380
        %449 = vmatpush1.bf16.msra.mxu0 %v379
        %450 = vmatprep.subr.bf16.mxu0 0
        %451 = vmatpush1.bf16.msra.mxu0 0
        %452 = vmatprep.subr.bf16.mxu0 0
        %453 = vmatpush1.bf16.msra.mxu0 0
        %454 = vmatprep.subr.bf16.mxu0 0
        %455 = vmatpush1.bf16.msra.mxu0 0
        %456 = vmatprep.subr.bf16.mxu0 0
        %457 = vmatpush1.bf16.msra.mxu0 0
        %458 = vmatprep.subr.bf16.mxu0 0
        %459 = vmatpush1.bf16.msra.mxu0 0
        %460 = vmatprep.subr.bf16.mxu0 0
        %461 = vmatpush1.bf16.msra.mxu0 0
        %462 = vmatprep.subr.bf16.mxu0 0
        %463 = vmatpush1.bf16.msra.mxu0 0
        %464 = vmatprep.subr.bf16.mxu0 0
        %465 = vmatpush1.bf16.msra.mxu0 0
        %466 = vmatprep.subr.bf16.mxu0 0
        %467 = vmatpush1.bf16.msra.mxu0 0
        %468 = vmatprep.subr.bf16.mxu0 0
        %469 = vmatpush1.bf16.msra.mxu0 0
        %470 = vmatprep.subr.bf16.mxu0 0
        %471 = vmatpush1.bf16.msra.mxu0 0
        %472 = vmatprep.subr.bf16.mxu0 0
        %473 = vmatpush1.bf16.msra.mxu0 0
        %474 = vmatprep.mubr.bf16.mxu0 0
        %475 = vmatmul.mubr.bf16.gmra.mrb[0].mxu0 %v399
        %v476 = vpop.f32.mrb[0].mxu0
        %v477 = vadd.f32 0.0, %v476
        %v478 = vpop.f32.mrb[0].mxu0
        %v479 = vadd.f32 0.0, %v478
        %v480 = vpop.f32.mrb[0].mxu0
        %v481 = vpop.f32.mrb[0].mxu0
        %482 = vdwg.mxu0
        %v483 = vmax.f32 %v436, 0.0
        %v484 = vmax.f32 %v438, 0.0
        %v485 = vmax.f32 %v477, 0.0
        %v486 = vmax.f32 %v479, 0.0
        %v487 = vadd.f32 %v483, 1.0
        %v488 = vadd.f32 %v484, 1.0
        %v489 = vadd.f32 %v485, 1.0
        %v490 = vadd.f32 %v486, 1.0
        %v491 = vlog2.pop %v487
        %v492 = vmul.f32 %v491, 0.6931472
        %v493 = vlog2.pop %v488
        %v494 = vmul.f32 %v493, 0.6931472
        %v495 = vlog2.pop %v489
        %v496 = vmul.f32 %v495, 0.6931472
        %v497 = vlog2.pop %v490
        %v498 = vmul.f32 %v497, 0.6931472
        %v499 = vrot.slane %v492, 4
        %v500 = vmax.f32 %v492, %v499
        %v501 = vrot.slane %v500, 2
        %v502 = vmax.f32 %v500, %v501
        %v503 = vrot.slane %v502, 1
        %v504 = vmax.f32 %v502, %v503
        %v505 = vrot.slane %v494, 4
        %v506 = vmax.f32 %v494, %v505
        %v507 = vrot.slane %v506, 2
        %v508 = vmax.f32 %v506, %v507
        %v509 = vrot.slane %v508, 1
        %v510 = vmax.f32 %v508, %v509
        %v511 = vrot.slane %v496, 4
        %v512 = vmax.f32 %v496, %v511
        %v513 = vrot.slane %v512, 2
        %v514 = vmax.f32 %v512, %v513
        %v515 = vrot.slane %v514, 1
        %v516 = vmax.f32 %v514, %v515
        %v517 = vrot.slane %v498, 4
        %v518 = vmax.f32 %v498, %v517
        %v519 = vrot.slane %v518, 2
        %v520 = vmax.f32 %v518, %v519
        %v521 = vrot.slane %v520, 1
        %v522 = vmax.f32 %v520, %v521
        %v523 = vld [vmem:[#allocation2] sm:$0x1]
        %v524 = vld [vmem:[#allocation9] sm:$0x1]
        %v525 = vstv %s310
        %v526 = vsub.s32 %v524, %v525
        %527 = vset.pattern.permute.xlu0 0
        %528 = vperm.xlu0 %527, %v526
        %v529 = vpop.permute.xlu0 %528
        %vm530 = vcmp.eq.s32.totalorder %v312, %v529
        %vm531 = vcmp.eq.s32.totalorder %v313, %v529
        %vm532 = vcmp.eq.s32.totalorder %v314, %v529
        %vm533 = vcmp.eq.s32.totalorder %v315, %v529
        %v534 = vsel %vm530, 1, 0
        %v535 = vsel %vm531, 1, 0
        %v536 = vsel %vm532, 1, 0
        %v537 = vsel %vm533, 1, 0
        %v538 = vcvt.s32.f32 %v534
        %v539 = vcvt.s32.f32 %v535
        %v540 = vcvt.s32.f32 %v536
        %v541 = vcvt.s32.f32 %v537
        %v542 = vadd.f32 %v538, 0.0
        %v543 = vadd.f32 %v539, 0.0
        %v544 = vadd.f32 %v540, 0.0
        %v545 = vadd.f32 %v541, 0.0
        %546 = vset.pattern.permute.xlu0 1
        %547 = vperm.xlu0 %546, %v526
        %v548 = vpop.permute.xlu0 %547
        %vm549 = vcmp.eq.s32.totalorder %v312, %v548
        %vm550 = vcmp.eq.s32.totalorder %v313, %v548
        %vm551 = vcmp.eq.s32.totalorder %v314, %v548
        %vm552 = vcmp.eq.s32.totalorder %v315, %v548
        %v553 = vsel %vm549, 1, 0
        %v554 = vsel %vm550, 1, 0
        %v555 = vsel %vm551, 1, 0
        %v556 = vsel %vm552, 1, 0
        %v557 = vcvt.s32.f32 %v553
        %v558 = vcvt.s32.f32 %v554
        %v559 = vcvt.s32.f32 %v555
        %v560 = vcvt.s32.f32 %v556
        %v561 = vadd.f32 %v542, %v557
        %v562 = vadd.f32 %v543, %v558
        %v563 = vadd.f32 %v544, %v559
        %v564 = vadd.f32 %v545, %v560
        %565 = vset.pattern.permute.xlu0 2
        %566 = vperm.xlu0 %565, %v526
        %v567 = vpop.permute.xlu0 %566
        %vm568 = vcmp.eq.s32.totalorder %v312, %v567
        %vm569 = vcmp.eq.s32.totalorder %v313, %v567
        %vm570 = vcmp.eq.s32.totalorder %v314, %v567
        %vm571 = vcmp.eq.s32.totalorder %v315, %v567
        %v572 = vsel %vm568, 1, 0
        %v573 = vsel %vm569, 1, 0
        %v574 = vsel %vm570, 1, 0
        %v575 = vsel %vm571, 1, 0
        %v576 = vcvt.s32.f32 %v572
        %v577 = vcvt.s32.f32 %v573
        %v578 = vcvt.s32.f32 %v574
        %v579 = vcvt.s32.f32 %v575
        %v580 = vadd.f32 %v561, %v576
        %v581 = vadd.f32 %v562, %v577
        %v582 = vadd.f32 %v563, %v578
        %v583 = vadd.f32 %v564, %v579
        %584 = vset.pattern.permute.xlu0 3
        %585 = vperm.xlu0 %584, %v526
        %v586 = vpop.permute.xlu0 %585
        %vm587 = vcmp.eq.s32.totalorder %v312, %v586
        %vm588 = vcmp.eq.s32.totalorder %v313, %v586
        %vm589 = vcmp.eq.s32.totalorder %v314, %v586
        %vm590 = vcmp.eq.s32.totalorder %v315, %v586
        %v591 = vsel %vm587, 1, 0
        %v592 = vsel %vm588, 1, 0
        %v593 = vsel %vm589, 1, 0
        %v594 = vsel %vm590, 1, 0
        %v595 = vcvt.s32.f32 %v591
        %v596 = vcvt.s32.f32 %v592
        %v597 = vcvt.s32.f32 %v593
        %v598 = vcvt.s32.f32 %v594
        %v599 = vadd.f32 %v580, %v595
        %v600 = vadd.f32 %v581, %v596
        %v601 = vadd.f32 %v582, %v597
        %v602 = vadd.f32 %v583, %v598
        %v603 = vmul.f32 %v504, %v599
        %v604 = vmul.f32 %v510, %v600
        %v605 = vmul.f32 %v516, %v601
        %v606 = vmul.f32 %v522, %v602
        %vm607 = vcmask 1040384
        %v608 = vsel %vm607, %v603, 0.0
        %v609 = vsel %vm607, %v604, 0.0
        %v610 = vadd.f32 %v608, %v609
        %v611 = vsel %vm607, %v605, 0.0
        %v612 = vadd.f32 %v610, %v611
        %v613 = vsel %vm607, %v606, 0.0
        %v614 = vadd.f32 %v612, %v613
        %615 = vadd.xlane.f32.xlu0 %v614
        %v616 = vpop.xlane.xlu0 %615
        %v617 = vadd.f32 %v523, %v616
        %vm618 = vcmask 0
        %619 = vst.msk [vmem:[#allocation2] sm:$0x1] %vm618, %v617
        %v620 = vld [vmem:[#allocation3] sm:$0x1]
        %v621 = vld [vmem:[#allocation10] sm:$0x1]
        %v622 = vsub.s32 %v621, %v525
        %623 = vset.pattern.permute.xlu0 0
        %624 = vperm.xlu0 %623, %v622
        %v625 = vpop.permute.xlu0 %624
        %vm626 = vcmp.eq.s32.totalorder %v312, %v625
        %vm627 = vcmp.eq.s32.totalorder %v313, %v625
        %vm628 = vcmp.eq.s32.totalorder %v314, %v625
        %vm629 = vcmp.eq.s32.totalorder %v315, %v625
        %v630 = vsel %vm626, 1, 0
        %v631 = vsel %vm627, 1, 0
        %v632 = vsel %vm628, 1, 0
        %v633 = vsel %vm629, 1, 0
        %v634 = vcvt.s32.f32 %v630
        %v635 = vcvt.s32.f32 %v631
        %v636 = vcvt.s32.f32 %v632
        %v637 = vcvt.s32.f32 %v633
        %v638 = vadd.f32 %v634, 0.0
        %v639 = vadd.f32 %v635, 0.0
        %v640 = vadd.f32 %v636, 0.0
        %v641 = vadd.f32 %v637, 0.0
        %642 = vset.pattern.permute.xlu0 1
        %643 = vperm.xlu0 %642, %v622
        %v644 = vpop.permute.xlu0 %643
        %vm645 = vcmp.eq.s32.totalorder %v312, %v644
        %vm646 = vcmp.eq.s32.totalorder %v313, %v644
        %vm647 = vcmp.eq.s32.totalorder %v314, %v644
        %vm648 = vcmp.eq.s32.totalorder %v315, %v644
        %v649 = vsel %vm645, 1, 0
        %v650 = vsel %vm646, 1, 0
        %v651 = vsel %vm647, 1, 0
        %v652 = vsel %vm648, 1, 0
        %v653 = vcvt.s32.f32 %v649
        %v654 = vcvt.s32.f32 %v650
        %v655 = vcvt.s32.f32 %v651
        %v656 = vcvt.s32.f32 %v652
        %v657 = vadd.f32 %v638, %v653
        %v658 = vadd.f32 %v639, %v654
        %v659 = vadd.f32 %v640, %v655
        %v660 = vadd.f32 %v641, %v656
        %661 = vset.pattern.permute.xlu0 2
        %662 = vperm.xlu0 %661, %v622
        %v663 = vpop.permute.xlu0 %662
        %vm664 = vcmp.eq.s32.totalorder %v312, %v663
        %vm665 = vcmp.eq.s32.totalorder %v313, %v663
        %vm666 = vcmp.eq.s32.totalorder %v314, %v663
        %vm667 = vcmp.eq.s32.totalorder %v315, %v663
        %v668 = vsel %vm664, 1, 0
        %v669 = vsel %vm665, 1, 0
        %v670 = vsel %vm666, 1, 0
        %v671 = vsel %vm667, 1, 0
        %v672 = vcvt.s32.f32 %v668
        %v673 = vcvt.s32.f32 %v669
        %v674 = vcvt.s32.f32 %v670
        %v675 = vcvt.s32.f32 %v671
        %v676 = vadd.f32 %v657, %v672
        %v677 = vadd.f32 %v658, %v673
        %v678 = vadd.f32 %v659, %v674
        %v679 = vadd.f32 %v660, %v675
        %680 = vset.pattern.permute.xlu0 3
        %681 = vperm.xlu0 %680, %v622
        %v682 = vpop.permute.xlu0 %681
        %vm683 = vcmp.eq.s32.totalorder %v312, %v682
        %vm684 = vcmp.eq.s32.totalorder %v313, %v682
        %vm685 = vcmp.eq.s32.totalorder %v314, %v682
        %vm686 = vcmp.eq.s32.totalorder %v315, %v682
        %v687 = vsel %vm683, 1, 0
        %v688 = vsel %vm684, 1, 0
        %v689 = vsel %vm685, 1, 0
        %v690 = vsel %vm686, 1, 0
        %v691 = vcvt.s32.f32 %v687
        %v692 = vcvt.s32.f32 %v688
        %v693 = vcvt.s32.f32 %v689
        %v694 = vcvt.s32.f32 %v690
        %v695 = vadd.f32 %v676, %v691
        %v696 = vadd.f32 %v677, %v692
        %v697 = vadd.f32 %v678, %v693
        %v698 = vadd.f32 %v679, %v694
        %v699 = vmul.f32 %v504, %v695
        %v700 = vmul.f32 %v510, %v696
        %v701 = vmul.f32 %v516, %v697
        %v702 = vmul.f32 %v522, %v698
        %v703 = vsel %vm607, %v699, 0.0
        %v704 = vsel %vm607, %v700, 0.0
        %v705 = vadd.f32 %v703, %v704
        %v706 = vsel %vm607, %v701, 0.0
        %v707 = vadd.f32 %v705, %v706
        %v708 = vsel %vm607, %v702, 0.0
        %v709 = vadd.f32 %v707, %v708
        %710 = vadd.xlane.f32.xlu0 %v709
        %v711 = vpop.xlane.xlu0 %710
        %v712 = vadd.f32 %v620, %v711
        %713 = vst.msk [vmem:[#allocation3] sm:$0x1] %vm618, %v712
        %s714 = scalar_lea.vmem [#allocation4], 4
        %v715 = vld [vmem:[%s714] sm:$0xf]
        %v717 = vsel %vm397, %v715, 0
        %719 = vmatprep.subr.bf16.mxu0 %v366
        %720 = vmatpush1.bf16.msra.mxu0 %v365
        %721 = vmatprep.subr.bf16.mxu0 %v370
        %722 = vmatpush1.bf16.msra.mxu0 %v369
        %723 = vmatprep.subr.bf16.mxu0 %v374
        %724 = vmatpush1.bf16.msra.mxu0 %v373
        %725 = vmatprep.subr.bf16.mxu0 %v378
        %726 = vmatpush1.bf16.msra.mxu0 %v377
        %727 = vmatprep.subr.bf16.mxu0 0
        %728 = vmatpush1.bf16.msra.mxu0 0
        %729 = vmatprep.subr.bf16.mxu0 0
        %730 = vmatpush1.bf16.msra.mxu0 0
        %731 = vmatprep.subr.bf16.mxu0 0
        %732 = vmatpush1.bf16.msra.mxu0 0
        %733 = vmatprep.subr.bf16.mxu0 0
        %734 = vmatpush1.bf16.msra.mxu0 0
        %735 = vmatprep.subr.bf16.mxu0 0
        %736 = vmatpush1.bf16.msra.mxu0 0
        %737 = vmatprep.subr.bf16.mxu0 0
        %738 = vmatpush1.bf16.msra.mxu0 0
        %739 = vmatprep.subr.bf16.mxu0 0
        %740 = vmatpush1.bf16.msra.mxu0 0
        %741 = vmatprep.subr.bf16.mxu0 0
        %742 = vmatpush1.bf16.msra.mxu0 0
        %743 = vmatprep.subr.bf16.mxu0 0
        %744 = vmatpush1.bf16.msra.mxu0 0
        %745 = vmatprep.subr.bf16.mxu0 0
        %746 = vmatpush1.bf16.msra.mxu0 0
        %747 = vmatprep.subr.bf16.mxu0 0
        %748 = vmatpush1.bf16.msra.mxu0 0
        %749 = vmatprep.subr.bf16.mxu0 0
        %750 = vmatpush1.bf16.msra.mxu0 0
        %751 = vmatprep.mubr.bf16.mxu0 0
        %752 = vmatmul.mubr.bf16.gmra.mrb[0].mxu0 %v717
        %v753 = vpop.f32.mrb[0].mxu0
        %v754 = vadd.f32 0.0, %v753
        %v755 = vpop.f32.mrb[0].mxu0
        %v756 = vadd.f32 0.0, %v755
        %v757 = vpop.f32.mrb[0].mxu0
        %v758 = vpop.f32.mrb[0].mxu0
        %759 = vdwg.mxu0
        %760 = vmatprep.subr.bf16.mxu0 %v368
        %761 = vmatpush1.bf16.msra.mxu0 %v367
        %762 = vmatprep.subr.bf16.mxu0 %v372
        %763 = vmatpush1.bf16.msra.mxu0 %v371
        %764 = vmatprep.subr.bf16.mxu0 %v376
        %765 = vmatpush1.bf16.msra.mxu0 %v375
        %766 = vmatprep.subr.bf16.mxu0 %v380
        %767 = vmatpush1.bf16.msra.mxu0 %v379
        %768 = vmatprep.subr.bf16.mxu0 0
        %769 = vmatpush1.bf16.msra.mxu0 0
        %770 = vmatprep.subr.bf16.mxu0 0
        %771 = vmatpush1.bf16.msra.mxu0 0
        %772 = vmatprep.subr.bf16.mxu0 0
        %773 = vmatpush1.bf16.msra.mxu0 0
        %774 = vmatprep.subr.bf16.mxu0 0
        %775 = vmatpush1.bf16.msra.mxu0 0
        %776 = vmatprep.subr.bf16.mxu0 0
        %777 = vmatpush1.bf16.msra.mxu0 0
        %778 = vmatprep.subr.bf16.mxu0 0
        %779 = vmatpush1.bf16.msra.mxu0 0
        %780 = vmatprep.subr.bf16.mxu0 0
        %781 = vmatpush1.bf16.msra.mxu0 0
        %782 = vmatprep.subr.bf16.mxu0 0
        %783 = vmatpush1.bf16.msra.mxu0 0
        %784 = vmatprep.subr.bf16.mxu0 0
        %785 = vmatpush1.bf16.msra.mxu0 0
        %786 = vmatprep.subr.bf16.mxu0 0
        %787 = vmatpush1.bf16.msra.mxu0 0
        %788 = vmatprep.subr.bf16.mxu0 0
        %789 = vmatpush1.bf16.msra.mxu0 0
        %790 = vmatprep.subr.bf16.mxu0 0
        %791 = vmatpush1.bf16.msra.mxu0 0
        %792 = vmatprep.mubr.bf16.mxu0 0
        %793 = vmatmul.mubr.bf16.gmra.mrb[0].mxu0 %v717
        %v794 = vpop.f32.mrb[0].mxu0
        %v795 = vadd.f32 0.0, %v794
        %v796 = vpop.f32.mrb[0].mxu0
        %v797 = vadd.f32 0.0, %v796
        %v798 = vpop.f32.mrb[0].mxu0
        %v799 = vpop.f32.mrb[0].mxu0
        %800 = vdwg.mxu0
        %v801 = vmax.f32 %v754, 0.0
        %v802 = vmax.f32 %v756, 0.0
        %v803 = vmax.f32 %v795, 0.0
        %v804 = vmax.f32 %v797, 0.0
        %v805 = vadd.f32 %v801, 1.0
        %v806 = vadd.f32 %v802, 1.0
        %v807 = vadd.f32 %v803, 1.0
        %v808 = vadd.f32 %v804, 1.0
        %v809 = vlog2.pop %v805
        %v810 = vmul.f32 %v809, 0.6931472
        %v811 = vlog2.pop %v806
        %v812 = vmul.f32 %v811, 0.6931472
        %v813 = vlog2.pop %v807
        %v814 = vmul.f32 %v813, 0.6931472
        %v815 = vlog2.pop %v808
        %v816 = vmul.f32 %v815, 0.6931472
        %v817 = vrot.slane %v810, 4
        %v818 = vmax.f32 %v810, %v817
        %v819 = vrot.slane %v818, 2
        %v820 = vmax.f32 %v818, %v819
        %v821 = vrot.slane %v820, 1
        %v822 = vmax.f32 %v820, %v821
        %v823 = vrot.slane %v812, 4
        %v824 = vmax.f32 %v812, %v823
        %v825 = vrot.slane %v824, 2
        %v826 = vmax.f32 %v824, %v825
        %v827 = vrot.slane %v826, 1
        %v828 = vmax.f32 %v826, %v827
        %v829 = vrot.slane %v814, 4
        %v830 = vmax.f32 %v814, %v829
        %v831 = vrot.slane %v830, 2
        %v832 = vmax.f32 %v830, %v831
        %v833 = vrot.slane %v832, 1
        %v834 = vmax.f32 %v832, %v833
        %v835 = vrot.slane %v816, 4
        %v836 = vmax.f32 %v816, %v835
        %v837 = vrot.slane %v836, 2
        %v838 = vmax.f32 %v836, %v837
        %v839 = vrot.slane %v838, 1
        %v840 = vmax.f32 %v838, %v839
        %s841 = scalar_lea.vmem [#allocation2], 1
        %v842 = vld [vmem:[%s841] sm:$0x1]
        %v843 = vld [vmem:[#allocation9 + $0x1] sm:$0x1]
        %v844 = vsub.s32 %v843, %v525
        %845 = vset.pattern.permute.xlu0 0
        %846 = vperm.xlu0 %845, %v844
        %v847 = vpop.permute.xlu0 %846
        %vm848 = vcmp.eq.s32.totalorder %v312, %v847
        %vm849 = vcmp.eq.s32.totalorder %v313, %v847
        %vm850 = vcmp.eq.s32.totalorder %v314, %v847
        %vm851 = vcmp.eq.s32.totalorder %v315, %v847
        %v852 = vsel %vm848, 1, 0
        %v853 = vsel %vm849, 1, 0
        %v854 = vsel %vm850, 1, 0
        %v855 = vsel %vm851, 1, 0
        %v856 = vcvt.s32.f32 %v852
        %v857 = vcvt.s32.f32 %v853
        %v858 = vcvt.s32.f32 %v854
        %v859 = vcvt.s32.f32 %v855
        %v860 = vadd.f32 %v856, 0.0
        %v861 = vadd.f32 %v857, 0.0
        %v862 = vadd.f32 %v858, 0.0
        %v863 = vadd.f32 %v859, 0.0
        %864 = vset.pattern.permute.xlu0 1
        %865 = vperm.xlu0 %864, %v844
        %v866 = vpop.permute.xlu0 %865
        %vm867 = vcmp.eq.s32.totalorder %v312, %v866
        %vm868 = vcmp.eq.s32.totalorder %v313, %v866
        %vm869 = vcmp.eq.s32.totalorder %v314, %v866
        %vm870 = vcmp.eq.s32.totalorder %v315, %v866
        %v871 = vsel %vm867, 1, 0
        %v872 = vsel %vm868, 1, 0
        %v873 = vsel %vm869, 1, 0
        %v874 = vsel %vm870, 1, 0
        %v875 = vcvt.s32.f32 %v871
        %v876 = vcvt.s32.f32 %v872
        %v877 = vcvt.s32.f32 %v873
        %v878 = vcvt.s32.f32 %v874
        %v879 = vadd.f32 %v860, %v875
        %v880 = vadd.f32 %v861, %v876
        %v881 = vadd.f32 %v862, %v877
        %v882 = vadd.f32 %v863, %v878
        %883 = vset.pattern.permute.xlu0 2
        %884 = vperm.xlu0 %883, %v844
        %v885 = vpop.permute.xlu0 %884
        %vm886 = vcmp.eq.s32.totalorder %v312, %v885
        %vm887 = vcmp.eq.s32.totalorder %v313, %v885
        %vm888 = vcmp.eq.s32.totalorder %v314, %v885
        %vm889 = vcmp.eq.s32.totalorder %v315, %v885
        %v890 = vsel %vm886, 1, 0
        %v891 = vsel %vm887, 1, 0
        %v892 = vsel %vm888, 1, 0
        %v893 = vsel %vm889, 1, 0
        %v894 = vcvt.s32.f32 %v890
        %v895 = vcvt.s32.f32 %v891
        %v896 = vcvt.s32.f32 %v892
        %v897 = vcvt.s32.f32 %v893
        %v898 = vadd.f32 %v879, %v894
        %v899 = vadd.f32 %v880, %v895
        %v900 = vadd.f32 %v881, %v896
        %v901 = vadd.f32 %v882, %v897
        %902 = vset.pattern.permute.xlu0 3
        %903 = vperm.xlu0 %902, %v844
        %v904 = vpop.permute.xlu0 %903
        %vm905 = vcmp.eq.s32.totalorder %v312, %v904
        %vm906 = vcmp.eq.s32.totalorder %v313, %v904
        %vm907 = vcmp.eq.s32.totalorder %v314, %v904
        %vm908 = vcmp.eq.s32.totalorder %v315, %v904
        %v909 = vsel %vm905, 1, 0
        %v910 = vsel %vm906, 1, 0
        %v911 = vsel %vm907, 1, 0
        %v912 = vsel %vm908, 1, 0
        %v913 = vcvt.s32.f32 %v909
        %v914 = vcvt.s32.f32 %v910
        %v915 = vcvt.s32.f32 %v911
        %v916 = vcvt.s32.f32 %v912
        %v917 = vadd.f32 %v898, %v913
        %v918 = vadd.f32 %v899, %v914
        %v919 = vadd.f32 %v900, %v915
        %v920 = vadd.f32 %v901, %v916
        %v921 = vmul.f32 %v822, %v917
        %v922 = vmul.f32 %v828, %v918
        %v923 = vmul.f32 %v834, %v919
        %v924 = vmul.f32 %v840, %v920
        %v925 = vsel %vm607, %v921, 0.0
        %v926 = vsel %vm607, %v922, 0.0
        %v927 = vadd.f32 %v925, %v926
        %v928 = vsel %vm607, %v923, 0.0
        %v929 = vadd.f32 %v927, %v928
        %v930 = vsel %vm607, %v924, 0.0
        %v931 = vadd.f32 %v929, %v930
        %932 = vadd.xlane.f32.xlu0 %v931
        %v933 = vpop.xlane.xlu0 %932
        %v934 = vadd.f32 %v842, %v933
        %935 = vst.msk [vmem:[%s841] sm:$0x1] %vm618, %v934
        %s936 = scalar_lea.vmem [#allocation3], 1
        %v937 = vld [vmem:[%s936] sm:$0x1]
        %v938 = vld [vmem:[#allocation10 + $0x1] sm:$0x1]
        %v939 = vsub.s32 %v938, %v525
        %940 = vset.pattern.permute.xlu0 0
        %941 = vperm.xlu0 %940, %v939
        %v942 = vpop.permute.xlu0 %941
        %vm943 = vcmp.eq.s32.totalorder %v312, %v942
        %vm944 = vcmp.eq.s32.totalorder %v313, %v942
        %vm945 = vcmp.eq.s32.totalorder %v314, %v942
        %vm946 = vcmp.eq.s32.totalorder %v315, %v942
        %v947 = vsel %vm943, 1, 0
        %v948 = vsel %vm944, 1, 0
        %v949 = vsel %vm945, 1, 0
        %v950 = vsel %vm946, 1, 0
        %v951 = vcvt.s32.f32 %v947
        %v952 = vcvt.s32.f32 %v948
        %v953 = vcvt.s32.f32 %v949
        %v954 = vcvt.s32.f32 %v950
        %v955 = vadd.f32 %v951, 0.0
        %v956 = vadd.f32 %v952, 0.0
        %v957 = vadd.f32 %v953, 0.0
        %v958 = vadd.f32 %v954, 0.0
        %959 = vset.pattern.permute.xlu0 1
        %960 = vperm.xlu0 %959, %v939
        %v961 = vpop.permute.xlu0 %960
        %vm962 = vcmp.eq.s32.totalorder %v312, %v961
        %vm963 = vcmp.eq.s32.totalorder %v313, %v961
        %vm964 = vcmp.eq.s32.totalorder %v314, %v961
        %vm965 = vcmp.eq.s32.totalorder %v315, %v961
        %v966 = vsel %vm962, 1, 0
        %v967 = vsel %vm963, 1, 0
        %v968 = vsel %vm964, 1, 0
        %v969 = vsel %vm965, 1, 0
        %v970 = vcvt.s32.f32 %v966
        %v971 = vcvt.s32.f32 %v967
        %v972 = vcvt.s32.f32 %v968
        %v973 = vcvt.s32.f32 %v969
        %v974 = vadd.f32 %v955, %v970
        %v975 = vadd.f32 %v956, %v971
        %v976 = vadd.f32 %v957, %v972
        %v977 = vadd.f32 %v958, %v973
        %978 = vset.pattern.permute.xlu0 2
        %979 = vperm.xlu0 %978, %v939
        %v980 = vpop.permute.xlu0 %979
        %vm981 = vcmp.eq.s32.totalorder %v312, %v980
        %vm982 = vcmp.eq.s32.totalorder %v313, %v980
        %vm983 = vcmp.eq.s32.totalorder %v314, %v980
        %vm984 = vcmp.eq.s32.totalorder %v315, %v980
        %v985 = vsel %vm981, 1, 0
        %v986 = vsel %vm982, 1, 0
        %v987 = vsel %vm983, 1, 0
        %v988 = vsel %vm984, 1, 0
        %v989 = vcvt.s32.f32 %v985
        %v990 = vcvt.s32.f32 %v986
        %v991 = vcvt.s32.f32 %v987
        %v992 = vcvt.s32.f32 %v988
        %v993 = vadd.f32 %v974, %v989
        %v994 = vadd.f32 %v975, %v990
        %v995 = vadd.f32 %v976, %v991
        %v996 = vadd.f32 %v977, %v992
        %997 = vset.pattern.permute.xlu0 3
        %998 = vperm.xlu0 %997, %v939
        %v999 = vpop.permute.xlu0 %998
        %vm1000 = vcmp.eq.s32.totalorder %v312, %v999
        %vm1001 = vcmp.eq.s32.totalorder %v313, %v999
        %vm1002 = vcmp.eq.s32.totalorder %v314, %v999
        %vm1003 = vcmp.eq.s32.totalorder %v315, %v999
        %v1004 = vsel %vm1000, 1, 0
        %v1005 = vsel %vm1001, 1, 0
        %v1006 = vsel %vm1002, 1, 0
        %v1007 = vsel %vm1003, 1, 0
        %v1008 = vcvt.s32.f32 %v1004
        %v1009 = vcvt.s32.f32 %v1005
        %v1010 = vcvt.s32.f32 %v1006
        %v1011 = vcvt.s32.f32 %v1007
        %v1012 = vadd.f32 %v993, %v1008
        %v1013 = vadd.f32 %v994, %v1009
        %v1014 = vadd.f32 %v995, %v1010
        %v1015 = vadd.f32 %v996, %v1011
        %v1016 = vmul.f32 %v822, %v1012
        %v1017 = vmul.f32 %v828, %v1013
        %v1018 = vmul.f32 %v834, %v1014
        %v1019 = vmul.f32 %v840, %v1015
        %v1020 = vsel %vm607, %v1016, 0.0
        %v1021 = vsel %vm607, %v1017, 0.0
        %v1022 = vadd.f32 %v1020, %v1021
        %v1023 = vsel %vm607, %v1018, 0.0
        %v1024 = vadd.f32 %v1022, %v1023
        %v1025 = vsel %vm607, %v1019, 0.0
        %v1026 = vadd.f32 %v1024, %v1025
        %1027 = vadd.xlane.f32.xlu0 %v1026
        %v1028 = vpop.xlane.xlu0 %1027
        %v1029 = vadd.f32 %v937, %v1028
        %1030 = vst.msk [vmem:[%s936] sm:$0x1] %vm618, %v1029
        %p1031 = scmp.eq.s32.totalorder %s22, 1
        // Predicated region
        $region65: #{tpu_custom_call.1} parent=39 // pred_check
          %p1032 = pneg %p1031
        $region66: #{tpu_custom_call.1} parent=39 // pred_check_branch
          %1034 = sbr.rel (%p1032) target = $region68
        $region67: #{tpu_custom_call.1} parent=39 // pred_region
          %v1035 = vld [vmem:[#allocation2] sm:$0x1]
          %v1036 = vld [vmem:[#allocation2 + $0x1] sm:$0x1]
          %v1037 = vld [vmem:[#allocation3] sm:$0x1]
          %v1038 = vld [vmem:[#allocation3 + $0x1] sm:$0x1]
          %v1039 = vsub.f32 %v1035, %v1037
          %v1040 = vsub.f32 %v1036, %v1038
          %v1041 = vld [vmem:[#allocation12] sm:$0x3]
          %v1044 = vunpack.c.l.s4 1966171168
          %v1045 = vunpack.c.0.s8 %v1044
          %v1046 = vlaneseq
          %v1047 = vshrl.u32 %v1046, 7
          %v1048 = vsub.s32 %v1045, %v1047
          %v1049 = vrot.slane %v1041, %v1048
          %v1050 = vcombine.high %v1049, %v1049
          %v1052 = vunpack.c.l.s4 1966171168
          %v1053 = vunpack.c.0.s8 %v1052
          %v1054 = vlaneseq
          %v1055 = vshrl.u32 %v1054, 7
          %v1056 = vsub.s32 %v1053, %v1055
          %v1057 = vrot.slane %v1049, %v1056
          %v1059 = vunpack.c.l.s4 1966171168
          %v1060 = vunpack.c.0.s8 %v1059
          %v1061 = vlaneseq
          %v1062 = vshrl.u32 %v1061, 7
          %v1063 = vsub.s32 %v1060, %v1062
          %v1064 = vrot.slane %v1050, %v1063
          %v1067 = vsub.f32 %v1039, %v1057
          %v1068 = vsub.f32 %v1040, %v1064
          %v1069 = vmul.f32 %v1067, %v1067
          %v1070 = vmul.f32 %v1068, %v1068
          %v1073 = vcombine.low %v1069, %v1070
          %v1075 = vunpack.c.l.s4 1966171168
          %v1076 = vunpack.c.0.s8 %v1075
          %v1077 = vlaneseq
          %v1078 = vshrl.u32 %v1077, 7
          %v1079 = vsub.s32 %v1076, %v1078
          %v1080 = vrot.slane %v1073, %v1079
          %v1082 = vunpack.c.l.s4 1966171168
          %v1083 = vunpack.c.0.s8 %v1082
          %v1084 = vlaneseq
          %v1085 = vshrl.u32 %v1084, 7
          %v1086 = vsub.s32 %v1083, %v1085
          %v1087 = vrot.slane %v1080, %v1086
          %vm1089 = vcmask 1024
          %v1090 = vsel %vm1089, %v1087, 0.0
          %1091 = vadd.xlane.f32.xlu0 %v1090
          %v1092 = vpop.xlane.xlu0 %1091
          %v1093 = vrot.slane %v1092, 4
          %v1094 = vadd.f32 %v1092, %v1093
          %v1095 = vrot.slane %v1094, 2
          %v1096 = vadd.f32 %v1094, %v1095
          %v1097 = vrot.slane %v1096, 1
          %v1098 = vadd.f32 %v1096, %v1097
          %s1099 = vtos %v1098
          %v1100 = vstv %s1099
          %v1101 = vmul.f32 %v1100, 0.5
          %1102 = vst.msk [vmem:[#allocation13] sm:$0x1] %vm618, %v1101
        $region68: #{tpu_custom_call.1} parent=39 // pred_fallthru
          _
        // Predicated region
        $region69: #{tpu_custom_call.1} parent=39 // pred_check
          %p1103 = pneg %p145
        $region70: #{tpu_custom_call.1} parent=39 // pred_check_branch
          %1105 = sbr.rel (%p1103) target = $region72
        $region71: #{tpu_custom_call.1} parent=39 // pred_region
          %s1107 = ssub.s32 16, 16
          %1108 = vsyncadd [#allocation6], %s1107
          %s1110 = sshll.u32 [#allocation13], 4
          %s1111 = int_to_ptr.vmem [resolvable:$true] %s1110
          %1113 = dma.vmem_to_hbm [thread:$0]  %s1111, 16, %s5, [#allocation6]
        $region72: #{tpu_custom_call.1} parent=39 // pred_fallthru
          _
        // Predicated region
        $region73: #{tpu_custom_call.1} parent=39 // pred_check
          %p1114 = pneg %p145
        $region74: #{tpu_custom_call.1} parent=39 // pred_check_branch
          %1116 = sbr.rel (%p1114) target = $region76
        $region75: #{tpu_custom_call.1} parent=39 // pred_region
          %1117 = dma.done [#allocation6], 16
        $region76: #{tpu_custom_call.1} parent=39 // pred_fallthru
          _
      $region40: #{tpu_custom_call.1} parent=5 // pred_fallthru
        _
      %p1118 = scmp.le.s32.totalorder 2, %s17
      // Predicated region
      $region77: #{tpu_custom_call.1} parent=5 // pred_check
        %p1119 = pneg %p1118
      $region78: #{tpu_custom_call.1} parent=5 // pred_check_branch
        %1121 = sbr.rel (%p1119) target = $region80
      $region79: #{tpu_custom_call.1} parent=5 // pred_region
        %s1122 = ssub.s32 %s17, 2
      $region80: #{tpu_custom_call.1} parent=5 // pred_fallthru
        _
    $region6: #{tpu_custom_call.1} parent=1 // loop_footer
      %s21 = sadd.s32 1, %s17
    $region7: #{tpu_custom_call.1} parent=1 // loop_footer_branch
      %16 = sbr.rel target = $region3
    $region8: #{tpu_custom_call.1} parent=1 // loop_exit
      _
    %1123 = vsyncpa [#allocation5], 1
    %s1124 = scalar_lea.sflag [#allocation5], 1
    %1125 = vsyncpa %s1124, 1
    %1126 = vsyncpa [#allocation8], 1
    %s1127 = scalar_lea.sflag [#allocation8], 1
    %1128 = vsyncpa %s1127, 1
    %1129 = vsyncpa [#allocation11], 1
    %1130 = vsyncpa [#allocation6], 1
    %s1131 = scalar_lea.sflag [#allocation6], 1
    %1132 = vsyncpa %s1131, 1

</llo_original>
